<compile_context>
chip_gen: v7x
topology: tpu7x:2x2x1
jax: 0.10.0
libtpu: 0.0.40
codegen_flags: <defaults>
</compile_context>

<pallas_src>
import jax
import jax.numpy as jnp
from jax.experimental import pallas as pl
from jax.experimental.pallas import tpu as pltpu

# ---------------- problem sizes (small, consistent with the module) ----------------
B = 256        # batch
DS = 16        # state dim
DA = 8         # action dim
H = 32         # hidden_dim
H2 = 2 * H     # hidden_dim * 2
H4 = 2 * H2    # both heads stacked
N_HIDDEN = 3   # hidden_layers
LANES = 128    # lane width / base batch tile


# ---------------- kernel ----------------
def twinq_kernel(s_ref, a_ref, w_enc_ref, w_mid_ref, w_out_ref, b_ref, out_ref):
    # s_ref: (DS, TB), a_ref: (DA, TB)  -- features on sublanes, batch on lanes.
    b = b_ref[...]                                               # (6, 4H, 1) bias slab

    # in-kernel concat (8-aligned sublane chunks) replaces the wrapper concat.
    x = jnp.concatenate([s_ref[...], a_ref[...]], axis=0)       # (DS+DA, TB)

    # Shared encoders, fused block-diagonally: (2H, DS+DA) @ (DS+DA, TB)
    x = jnp.dot(w_enc_ref[...], x, preferred_element_type=jnp.float32) + b[0, :H2]
    x = jnp.maximum(x, 0.0)                                      # (2H, TB) == relu(x0)^T

    # First hidden layer of BOTH heads in one stacked matmul: (4H, 2H) @ (2H, TB)
    x = jnp.dot(w_mid_ref[0][:, :H2], x, preferred_element_type=jnp.float32) + b[1]
    x = jnp.maximum(x, 0.0)                                      # (4H, TB): rows [0:2H]=q1, [2H:4H]=q2

    # Remaining hidden layers, heads independent via block-diagonal weights.
    for l in range(1, N_HIDDEN):
        x = jnp.dot(w_mid_ref[l], x, preferred_element_type=jnp.float32) + b[1 + l]
        x = jnp.maximum(x, 0.0)                                  # (4H, TB)

    w_out = w_out_ref[...]                                       # (2H+8, 4H)

    # out MLP layer 1 (block-diagonal): (2H, 4H) @ (4H, TB)
    h = jnp.dot(w_out[:H2], x, preferred_element_type=jnp.float32) + b[4, :H2]
    h = jnp.maximum(h, 0.0)                                      # (2H, TB): rows [0:H]=h_q1, [H:2H]=h_q2

    # out MLP layer 2: (8, 2H) @ (2H, TB); rows 0/1 are q1/q2, rows 2..7 are zero pad.
    q = jnp.dot(w_out[H2:, :H2], h, preferred_element_type=jnp.float32) + b[5, :8]

    # TwinQ: min over the two heads -> (1, TB), lane-dense store.
    out_ref[...] = jnp.minimum(q[0:1, :], q[1:2, :])


# ---------------- tile selection ----------------
def _prefer_even_grid():
    # v7x has two TensorCores per chip: keep the parallel grid even so both get
    # work.  Single-TC chips (v5e / v6e) prefer the fewest grid steps.
    try:
        kind = jax.devices()[0].device_kind.lower()
    except Exception:
        return False
    return ("v7" in kind) or ("7x" in kind)


def _pick_tb(b_pad):
    cands = [t for t in range(LANES, min(512, b_pad) + 1, LANES) if b_pad % t == 0]
    if not cands:
        return LANES
    if _prefer_even_grid():
        even = [t for t in cands if (b_pad // t) % 2 == 0]
        if even:
            return max(even)          # widest tile with an even step count (v7x)
    return max(cands)                 # widest tile -> fewest serial grid steps


# ---------------- wrapper ----------------
def twinq_forward(state, action, kernel_params, tb=None):
    w_enc, w_mid, w_out, b_all = kernel_params

    bsz = state.shape[0]
    b_pad = pl.cdiv(bsz, LANES) * LANES
    if tb is None:
        tb = _pick_tb(b_pad)
    n_tiles = b_pad // tb

    # Batch on lanes, features on sublanes.  No wrapper-side concat.
    s_t = state.T                                                # (DS, B)
    a_t = action.T                                               # (DA, B)
    if b_pad != bsz:
        s_t = jnp.pad(s_t, ((0, 0), (0, b_pad - bsz)))
        a_t = jnp.pad(a_t, ((0, 0), (0, b_pad - bsz)))

    def const_spec(arr):
        nd = arr.ndim
        return pl.BlockSpec(arr.shape, lambda i: (0,) * nd)      # VMEM-resident weights

    flops = 2 * b_pad * (H2 * (DS + DA) + H4 * H2
                         + (N_HIDDEN - 1) * H4 * H4 + H2 * H4 + 8 * H2)
    bytes_accessed = 4 * (s_t.size + a_t.size + w_enc.size + w_mid.size
                          + w_out.size + b_all.size + b_pad)
    cost = pl.CostEstimate(flops=flops, transcendentals=0,
                           bytes_accessed=bytes_accessed)

    out = pl.pallas_call(
        twinq_kernel,
        out_shape=jax.ShapeDtypeStruct((1, b_pad), jnp.float32),
        grid=(n_tiles,),
        in_specs=[
            pl.BlockSpec((DS, tb), lambda i: (0, i)),            # state^T tile
            pl.BlockSpec((DA, tb), lambda i: (0, i)),            # action^T tile
            const_spec(w_enc), const_spec(w_mid),
            const_spec(w_out), const_spec(b_all),
        ],
        out_specs=pl.BlockSpec((1, tb), lambda i: (0, i)),       # lane-dense output row
        compiler_params=pltpu.CompilerParams(dimension_semantics=("parallel",)),
        cost_estimate=cost,
    )(s_t, a_t, w_enc, w_mid, w_out, b_all)
    return out[0, :bsz]


# ---------------- parameters ----------------
def init_params(key):
    """Deterministic PyTorch-Linear-style init: U(-1/sqrt(fan_in), 1/sqrt(fan_in))."""
    def lin(k, fan_in, shape):
        bound = 1.0 / jnp.sqrt(jnp.float32(fan_in))
        return jax.random.uniform(k, shape, jnp.float32, -bound, bound)

    keys = jax.random.split(key, 10)
    ws  = lin(keys[0], DS, (DS, H))                 # shared state encoder
    bs  = lin(keys[1], DS, (H,))
    wa  = lin(keys[2], DA, (DA, H))                 # shared action encoder
    ba  = lin(keys[3], DA, (H,))
    wh  = lin(keys[4], H2, (2, N_HIDDEN, H2, H2))   # per-head hidden linears
    bh  = lin(keys[5], H2, (2, N_HIDDEN, H2))
    wo1 = lin(keys[6], H2, (2, H2, H))              # per-head out MLP layer 1
    bo1 = lin(keys[7], H2, (2, H))
    wo2 = lin(keys[8], H,  (2, H))                  # per-head out MLP layer 2
    bo2 = lin(keys[9], H,  (2,))
    return (ws, bs, wa, ba, wh, bh, wo1, bo1, wo2, bo2)


def pack_params(params):
    """Pack transposed / head-fused / block-diagonal weights into 4 slabs (6 kernel inputs total)."""
    ws, bs, wa, ba, wh, bh, wo1, bo1, wo2, bo2 = params

    # Shared encoder, block-diagonal, transposed: (2H, DS+DA)
    w_enc = jnp.zeros((H2, DS + DA), jnp.float32)
    w_enc = w_enc.at[:H, :DS].set(ws.T)
    w_enc = w_enc.at[H:, DS:].set(wa.T)

    # Hidden layers, one slab (N_HIDDEN, 4H, 4H):
    #   slab 0: layer-0 weights of both heads stacked on rows, cols [0:2H] (rest zero)
    #   slabs 1..: block-diagonal (head q occupies rows/cols [q*2H:(q+1)*2H])
    w_mid = jnp.zeros((N_HIDDEN, H4, H4), jnp.float32)
    w_mid = w_mid.at[0, :H2, :H2].set(wh[0, 0].T)
    w_mid = w_mid.at[0, H2:, :H2].set(wh[1, 0].T)
    for l in range(1, N_HIDDEN):
        w_mid = w_mid.at[l, :H2, :H2].set(wh[0, l].T)
        w_mid = w_mid.at[l, H2:, H2:].set(wh[1, l].T)

    # Out MLP, both layers in one slab (2H + 8, 4H):
    #   rows [0:2H]    : out layer 1, block-diagonal (4H -> 2H)
    #   rows [2H:2H+2] : out layer 2 (2H -> 2), padded to 8 rows
    w_out = jnp.zeros((H2 + 8, H4), jnp.float32)
    w_out = w_out.at[:H, :H2].set(wo1[0].T)
    w_out = w_out.at[H:H2, H2:].set(wo1[1].T)
    w_out = w_out.at[H2, :H].set(wo2[0])
    w_out = w_out.at[H2 + 1, H:H2].set(wo2[1])

    # All biases in one (6, 4H, 1) slab (column vectors broadcast over the lane/batch axis).
    b_all = jnp.zeros((6, H4, 1), jnp.float32)
    b_all = b_all.at[0, :H, 0].set(bs)
    b_all = b_all.at[0, H:H2, 0].set(ba)
    for l in range(N_HIDDEN):
        b_all = b_all.at[1 + l, :H2, 0].set(bh[0, l])
        b_all = b_all.at[1 + l, H2:, 0].set(bh[1, l])
    b_all = b_all.at[4, :H, 0].set(bo1[0])
    b_all = b_all.at[4, H:H2, 0].set(bo1[1])
    b_all = b_all.at[5, 0, 0].set(bo2[0])
    b_all = b_all.at[5, 1, 0].set(bo2[1])

    return (w_enc, w_mid, w_out, b_all)


def twinq_reference(state, action, params):
    """Pure-JAX reference mirroring the PyTorch forward."""
    ws, bs, wa, ba, wh, bh, wo1, bo1, wo2, bo2 = params
    s_enc = state @ ws + bs
    a_enc = action @ wa + ba
    x0 = jax.nn.relu(jnp.concatenate([s_enc, a_enc], axis=-1))
    qs = []
    for q in range(2):
        x = x0
        for l in range(N_HIDDEN):
            x = jax.nn.relu(x @ wh[q, l] + bh[q, l])
        h = jax.nn.relu(x @ wo1[q] + bo1[q])
        qs.append(h @ wo2[q] + bo2[q])          # (B,)
    return jnp.minimum(qs[0], qs[1])


if __name__ == "__main__":
    key = jax.random.PRNGKey(0)
    k_s, k_a, k_p = jax.random.split(key, 3)
    state = jax.random.normal(k_s, (B, DS), jnp.float32)
    action = jax.random.normal(k_a, (B, DA), jnp.float32)
    params = init_params(k_p)
    kernel_params = pack_params(params)

    out = twinq_forward(state, action, kernel_params)
    out = jax.block_until_ready(out)

    ref = twinq_reference(state, action, params)
    if not jnp.allclose(out, ref, atol=1e-4, rtol=1e-4):
        max_err = jnp.max(jnp.abs(out - ref))
        raise AssertionError(f"mismatch, max abs err = {max_err}")

    print("KERNEL_OK")
</pallas_src>

<mosaic_0001>
module attributes {stable_mosaic.version = 11 : i64} {
  func.func @twinq_kernel(%arg0: i32, %arg1: memref<16x256xf32, #tpu.memory_space<vmem>>, %arg2: memref<8x256xf32, #tpu.memory_space<vmem>>, %arg3: memref<64x24xf32, #tpu.memory_space<vmem>>, %arg4: memref<3x128x128xf32, #tpu.memory_space<vmem>>, %arg5: memref<72x128xf32, #tpu.memory_space<vmem>>, %arg6: memref<6x128x1xf32, #tpu.memory_space<vmem>>, %arg7: memref<1x256xf32, #tpu.memory_space<vmem>>) attributes {dimension_semantics = [#tpu.dimension_semantics<parallel>], iteration_bounds = array<i64: 1>, scalar_prefetch = 0 : i64, scratch_operands = 0 : i64, tpu.core_type = #tpu.core_type<tc>, window_params = [{transform_indices = @transform_0, window_bounds = array<i64: 16, 256>}, {transform_indices = @transform_1, window_bounds = array<i64: 8, 256>}, {pipeline_mode = #tpu.pipeline_mode<synchronous>, transform_indices = @transform_2, window_bounds = array<i64: 64, 24>}, {pipeline_mode = #tpu.pipeline_mode<synchronous>, transform_indices = @transform_3, window_bounds = array<i64: 3, 128, 128>}, {pipeline_mode = #tpu.pipeline_mode<synchronous>, transform_indices = @transform_4, window_bounds = array<i64: 72, 128>}, {pipeline_mode = #tpu.pipeline_mode<synchronous>, transform_indices = @transform_5, window_bounds = array<i64: 6, 128, 1>}, {transform_indices = @transform_6, window_bounds = array<i64: 1, 256>}]} {
    %c0 = arith.constant 0 : index
    %c0_0 = arith.constant 0 : index
    %c0_1 = arith.constant 0 : index
    %0 = vector.load %arg6[%c0, %c0_0, %c0_1] : memref<6x128x1xf32, #tpu.memory_space<vmem>>, vector<6x128x1xf32>
    %c0_2 = arith.constant 0 : index
    %c0_3 = arith.constant 0 : index
    %1 = vector.load %arg1[%c0_2, %c0_3] : memref<16x256xf32, #tpu.memory_space<vmem>>, vector<16x256xf32>
    %c0_4 = arith.constant 0 : index
    %c0_5 = arith.constant 0 : index
    %2 = vector.load %arg2[%c0_4, %c0_5] : memref<8x256xf32, #tpu.memory_space<vmem>>, vector<8x256xf32>
    %3 = tpu.concatenate %1, %2 in 0 : vector<16x256xf32>, vector<8x256xf32> -> vector<24x256xf32>
    %c0_6 = arith.constant 0 : index
    %c0_7 = arith.constant 0 : index
    %4 = vector.load %arg3[%c0_6, %c0_7] : memref<64x24xf32, #tpu.memory_space<vmem>>, vector<64x24xf32>
    %cst = arith.constant dense<0.000000e+00> : vector<64x256xf32>
    %5 = tpu.matmul %4, %3, %cst {dimension_numbers = #tpu.dot_dimension_numbers<[1], [0], [0], [1], [0, 0, 1, 1], [], []>} : vector<64x24xf32>, vector<24x256xf32>, vector<64x256xf32> -> vector<64x256xf32>
    %6 = vector.extract_strided_slice %0 {offsets = [0, 0, 0], sizes = [1, 64, 1], strides = [1, 1, 1]} : vector<6x128x1xf32> to vector<1x64x1xf32>
    %7 = vector.shape_cast %6 : vector<1x64x1xf32> to vector<64x1xf32>
    %8 = vector.broadcast %7 : vector<64x1xf32> to vector<64x256xf32>
    %9 = arith.addf %5, %8 : vector<64x256xf32>
    %cst_8 = arith.constant 0.000000e+00 : f32
    %10 = vector.broadcast %cst_8 : f32 to vector<64x256xf32>
    %11 = arith.maximumf %9, %10 : vector<64x256xf32>
    %c0_9 = arith.constant 0 : index
    %c0_10 = arith.constant 0 : index
    %c0_11 = arith.constant 0 : index
    %12 = vector.load %arg4[%c0_9, %c0_10, %c0_11] : memref<3x128x128xf32, #tpu.memory_space<vmem>>, vector<1x128x128xf32>
    %13 = vector.shape_cast %12 : vector<1x128x128xf32> to vector<128x128xf32>
    %14 = vector.extract_strided_slice %13 {offsets = [0, 0], sizes = [128, 64], strides = [1, 1]} : vector<128x128xf32> to vector<128x64xf32>
    %cst_12 = arith.constant dense<0.000000e+00> : vector<128x256xf32>
    %15 = tpu.matmul %14, %11, %cst_12 {dimension_numbers = #tpu.dot_dimension_numbers<[1], [0], [0], [1], [0, 0, 1, 1], [], []>} : vector<128x64xf32>, vector<64x256xf32>, vector<128x256xf32> -> vector<128x256xf32>
    %16 = vector.extract_strided_slice %0 {offsets = [1, 0, 0], sizes = [1, 128, 1], strides = [1, 1, 1]} : vector<6x128x1xf32> to vector<1x128x1xf32>
    %17 = vector.shape_cast %16 : vector<1x128x1xf32> to vector<128x1xf32>
    %18 = vector.broadcast %17 : vector<128x1xf32> to vector<128x256xf32>
    %19 = arith.addf %15, %18 : vector<128x256xf32>
    %cst_13 = arith.constant 0.000000e+00 : f32
    %20 = vector.broadcast %cst_13 : f32 to vector<128x256xf32>
    %21 = arith.maximumf %19, %20 : vector<128x256xf32>
    %c1 = arith.constant 1 : index
    %c0_14 = arith.constant 0 : index
    %c0_15 = arith.constant 0 : index
    %22 = vector.load %arg4[%c1, %c0_14, %c0_15] : memref<3x128x128xf32, #tpu.memory_space<vmem>>, vector<1x128x128xf32>
    %23 = vector.shape_cast %22 : vector<1x128x128xf32> to vector<128x128xf32>
    %cst_16 = arith.constant dense<0.000000e+00> : vector<128x256xf32>
    %24 = tpu.matmul %23, %21, %cst_16 {dimension_numbers = #tpu.dot_dimension_numbers<[1], [0], [0], [1], [0, 0, 1, 1], [], []>} : vector<128x128xf32>, vector<128x256xf32>, vector<128x256xf32> -> vector<128x256xf32>
    %25 = vector.extract_strided_slice %0 {offsets = [2, 0, 0], sizes = [1, 128, 1], strides = [1, 1, 1]} : vector<6x128x1xf32> to vector<1x128x1xf32>
    %26 = vector.shape_cast %25 : vector<1x128x1xf32> to vector<128x1xf32>
    %27 = vector.broadcast %26 : vector<128x1xf32> to vector<128x256xf32>
    %28 = arith.addf %24, %27 : vector<128x256xf32>
    %cst_17 = arith.constant 0.000000e+00 : f32
    %29 = vector.broadcast %cst_17 : f32 to vector<128x256xf32>
    %30 = arith.maximumf %28, %29 : vector<128x256xf32>
    %c2 = arith.constant 2 : index
    %c0_18 = arith.constant 0 : index
    %c0_19 = arith.constant 0 : index
    %31 = vector.load %arg4[%c2, %c0_18, %c0_19] : memref<3x128x128xf32, #tpu.memory_space<vmem>>, vector<1x128x128xf32>
    %32 = vector.shape_cast %31 : vector<1x128x128xf32> to vector<128x128xf32>
    %cst_20 = arith.constant dense<0.000000e+00> : vector<128x256xf32>
    %33 = tpu.matmul %32, %30, %cst_20 {dimension_numbers = #tpu.dot_dimension_numbers<[1], [0], [0], [1], [0, 0, 1, 1], [], []>} : vector<128x128xf32>, vector<128x256xf32>, vector<128x256xf32> -> vector<128x256xf32>
    %34 = vector.extract_strided_slice %0 {offsets = [3, 0, 0], sizes = [1, 128, 1], strides = [1, 1, 1]} : vector<6x128x1xf32> to vector<1x128x1xf32>
    %35 = vector.shape_cast %34 : vector<1x128x1xf32> to vector<128x1xf32>
    %36 = vector.broadcast %35 : vector<128x1xf32> to vector<128x256xf32>
    %37 = arith.addf %33, %36 : vector<128x256xf32>
    %cst_21 = arith.constant 0.000000e+00 : f32
    %38 = vector.broadcast %cst_21 : f32 to vector<128x256xf32>
    %39 = arith.maximumf %37, %38 : vector<128x256xf32>
    %c0_22 = arith.constant 0 : index
    %c0_23 = arith.constant 0 : index
    %40 = vector.load %arg5[%c0_22, %c0_23] : memref<72x128xf32, #tpu.memory_space<vmem>>, vector<72x128xf32>
    %41 = vector.extract_strided_slice %40 {offsets = [0, 0], sizes = [64, 128], strides = [1, 1]} : vector<72x128xf32> to vector<64x128xf32>
    %cst_24 = arith.constant dense<0.000000e+00> : vector<64x256xf32>
    %42 = tpu.matmul %41, %39, %cst_24 {dimension_numbers = #tpu.dot_dimension_numbers<[1], [0], [0], [1], [0, 0, 1, 1], [], []>} : vector<64x128xf32>, vector<128x256xf32>, vector<64x256xf32> -> vector<64x256xf32>
    %43 = vector.extract_strided_slice %0 {offsets = [4, 0, 0], sizes = [1, 64, 1], strides = [1, 1, 1]} : vector<6x128x1xf32> to vector<1x64x1xf32>
    %44 = vector.shape_cast %43 : vector<1x64x1xf32> to vector<64x1xf32>
    %45 = vector.broadcast %44 : vector<64x1xf32> to vector<64x256xf32>
    %46 = arith.addf %42, %45 : vector<64x256xf32>
    %cst_25 = arith.constant 0.000000e+00 : f32
    %47 = vector.broadcast %cst_25 : f32 to vector<64x256xf32>
    %48 = arith.maximumf %46, %47 : vector<64x256xf32>
    %49 = vector.extract_strided_slice %40 {offsets = [64, 0], sizes = [8, 64], strides = [1, 1]} : vector<72x128xf32> to vector<8x64xf32>
    %cst_26 = arith.constant dense<0.000000e+00> : vector<8x256xf32>
    %50 = tpu.matmul %49, %48, %cst_26 {dimension_numbers = #tpu.dot_dimension_numbers<[1], [0], [0], [1], [0, 0, 1, 1], [], []>} : vector<8x64xf32>, vector<64x256xf32>, vector<8x256xf32> -> vector<8x256xf32>
    %51 = vector.extract_strided_slice %0 {offsets = [5, 0, 0], sizes = [1, 8, 1], strides = [1, 1, 1]} : vector<6x128x1xf32> to vector<1x8x1xf32>
    %52 = vector.shape_cast %51 : vector<1x8x1xf32> to vector<8x1xf32>
    %53 = vector.broadcast %52 : vector<8x1xf32> to vector<8x256xf32>
    %54 = arith.addf %50, %53 : vector<8x256xf32>
    %55 = vector.extract_strided_slice %54 {offsets = [0, 0], sizes = [1, 256], strides = [1, 1]} : vector<8x256xf32> to vector<1x256xf32>
    %56 = vector.extract_strided_slice %54 {offsets = [1, 0], sizes = [1, 256], strides = [1, 1]} : vector<8x256xf32> to vector<1x256xf32>
    %57 = arith.minimumf %55, %56 : vector<1x256xf32>
    %c0_27 = arith.constant 0 : index
    %c0_28 = arith.constant 0 : index
    %58 = vector.load %arg7[%c0_27, %c0_28] : memref<1x256xf32, #tpu.memory_space<vmem>>, vector<1x256xf32>
    tpu.vector_store %arg7[%c0_27, %c0_28], %57 {strides = array<i32>} : memref<1x256xf32, #tpu.memory_space<vmem>>, vector<1x256xf32>,
    return
  }
  func.func @transform_0(%arg0: i32) -> (i32, i32) {
    %c0_i32 = arith.constant 0 : i32
    %c0_i32_0 = arith.constant 0 : i32
    return %c0_i32, %arg0 : i32, i32
  }
  func.func @transform_1(%arg0: i32) -> (i32, i32) {
    %c0_i32 = arith.constant 0 : i32
    %c0_i32_0 = arith.constant 0 : i32
    return %c0_i32, %arg0 : i32, i32
  }
  func.func @transform_2(%arg0: i32) -> (i32, i32) {
    %c0_i32 = arith.constant 0 : i32
    %c0_i32_0 = arith.constant 0 : i32
    %c0_i32_1 = arith.constant 0 : i32
    return %c0_i32, %c0_i32_0 : i32, i32
  }
  func.func @transform_3(%arg0: i32) -> (i32, i32, i32) {
    %c0_i32 = arith.constant 0 : i32
    %c0_i32_0 = arith.constant 0 : i32
    %c0_i32_1 = arith.constant 0 : i32
    %c0_i32_2 = arith.constant 0 : i32
    return %c0_i32, %c0_i32_0, %c0_i32_1 : i32, i32, i32
  }
  func.func @transform_4(%arg0: i32) -> (i32, i32) {
    %c0_i32 = arith.constant 0 : i32
    %c0_i32_0 = arith.constant 0 : i32
    %c0_i32_1 = arith.constant 0 : i32
    return %c0_i32, %c0_i32_0 : i32, i32
  }
  func.func @transform_5(%arg0: i32) -> (i32, i32, i32) {
    %c0_i32 = arith.constant 0 : i32
    %c0_i32_0 = arith.constant 0 : i32
    %c0_i32_1 = arith.constant 0 : i32
    %c0_i32_2 = arith.constant 0 : i32
    return %c0_i32, %c0_i32_0, %c0_i32_1 : i32, i32, i32
  }
  func.func @transform_6(%arg0: i32) -> (i32, i32) {
    %c0_i32 = arith.constant 0 : i32
    %c0_i32_0 = arith.constant 0 : i32
    return %c0_i32, %arg0 : i32, i32
  }
}

</mosaic_0001>

<llo_original>
// kernel: tpu_custom_call.1
$region0: #{tpu_custom_call.1}
  #allocation0 [shape = 'u32[]', space=smem, size = 0x4, offset = 0x4, fixed_abs, tag = 'smem constant byte address 0x4 - core index']
  #allocation1 [shape = 'u32[144,128]{1,0:T(1,128)}', space=vmem, size = 0x12000, scoped, tag = 'internal scratch']
  %s0 = inlined_call_operand.vmem [shape: f32[16,256], index: 0, kind: input, shape index: {}]
  %s1 = inlined_call_operand.vmem [shape: f32[8,256], index: 1, kind: input, shape index: {}]
  %s2 = inlined_call_operand.vmem [shape: f32[64,24], index: 2, kind: input, shape index: {}]
  %s3 = inlined_call_operand.vmem [shape: f32[3,128,128], index: 3, kind: input, shape index: {}]
  %s4 = inlined_call_operand.vmem [shape: f32[72,128], index: 4, kind: input, shape index: {}]
  %s5 = inlined_call_operand.vmem [shape: f32[6,128,1], index: 5, kind: input, shape index: {}]
  %s6 = inlined_call_operand.hbm [shape: f32[1,256], index: 6, kind: output, shape index: {}]
  %s7 = sld [smem:[#allocation0]]
  $region34: #{tpu_custom_call.1} parent=0
    _
  %s9 = ssub.s32 1, %s7
  %s10 = scalar_select 0, %s9, %s7
  $region1: #{tpu_custom_call.1} parent=0
    #allocation2 [shape = 'u8[1024]{0}', space=vmem, size = 0x400, scoped, tag = 'output window, operand 0, single buffered']
    #allocation3 [shape = 's32[1]{0}', space=sflag, size = 0x4, scoped, tag = 'scoped memory for tpu_custom_call.1']
    %11 = vsyncpa [#allocation3], 0
    // Predicated region
    $region2: #{tpu_custom_call.1} parent=1 // pred_check
      _
    $region3: #{tpu_custom_call.1} parent=1 // pred_check_branch
      %13 = sbr.rel (0) target = $region5
    $region4: #{tpu_custom_call.1} parent=1 // pred_region
      _
    $region5: #{tpu_custom_call.1} parent=1 // pred_fallthru
      _
    // Predicated region
    $region6: #{tpu_custom_call.1} parent=1 // pred_check
      _
    $region7: #{tpu_custom_call.1} parent=1 // pred_check_branch
      %15 = sbr.rel (0) target = $region9
    $region8: #{tpu_custom_call.1} parent=1 // pred_region
      _
    $region9: #{tpu_custom_call.1} parent=1 // pred_fallthru
      _
    // Predicated region
    $region10: #{tpu_custom_call.1} parent=1 // pred_check
      _
    $region11: #{tpu_custom_call.1} parent=1 // pred_check_branch
      %17 = sbr.rel (0) target = $region13
    $region12: #{tpu_custom_call.1} parent=1 // pred_region
      _
    $region13: #{tpu_custom_call.1} parent=1 // pred_fallthru
      _
    // Predicated region
    $region14: #{tpu_custom_call.1} parent=1 // pred_check
      _
    $region15: #{tpu_custom_call.1} parent=1 // pred_check_branch
      %19 = sbr.rel (0) target = $region17
    $region16: #{tpu_custom_call.1} parent=1 // pred_region
      _
    $region17: #{tpu_custom_call.1} parent=1 // pred_fallthru
      _
    // Predicated region
    $region18: #{tpu_custom_call.1} parent=1 // pred_check
      _
    $region19: #{tpu_custom_call.1} parent=1 // pred_check_branch
      %21 = sbr.rel (0) target = $region21
    $region20: #{tpu_custom_call.1} parent=1 // pred_region
      _
    $region21: #{tpu_custom_call.1} parent=1 // pred_fallthru
      _
    // Predicated region
    $region22: #{tpu_custom_call.1} parent=1 // pred_check
      _
    $region23: #{tpu_custom_call.1} parent=1 // pred_check_branch
      %23 = sbr.rel (0) target = $region25
    $region24: #{tpu_custom_call.1} parent=1 // pred_region
      _
    $region25: #{tpu_custom_call.1} parent=1 // pred_fallthru
      _
    %v24 = vld [vmem:[%s5] sm:$0xff]
    %v25 = vld [vmem:[%s5 + $0x8] sm:$0xff]
    %v26 = vld [vmem:[%s5 + $0x10] sm:$0xff]
    %v27 = vld [vmem:[%s5 + $0x18] sm:$0xff]
    %v28 = vld [vmem:[%s5 + $0x20] sm:$0xff]
    %v29 = vld [vmem:[%s5 + $0x28] sm:$0xff]
    %v30 = vld [vmem:[%s5 + $0x30] sm:$0xff]
    %v31 = vld [vmem:[%s5 + $0x38] sm:$0xff]
    %v32 = vld [vmem:[%s5 + $0x80] sm:$0xff]
    %v33 = vld [vmem:[%s5 + $0x88] sm:$0xff]
    %v34 = vld [vmem:[%s5 + $0x90] sm:$0xff]
    %v35 = vld [vmem:[%s5 + $0x98] sm:$0xff]
    %v36 = vld [vmem:[%s5 + $0xa0] sm:$0xff]
    %v37 = vld [vmem:[%s5 + $0xa8] sm:$0xff]
    %v38 = vld [vmem:[%s5 + $0xb0] sm:$0xff]
    %v39 = vld [vmem:[%s5 + $0xb8] sm:$0xff]
    %v40 = vld [vmem:[%s5 + $0xc0] sm:$0xff]
    %v41 = vld [vmem:[%s5 + $0xc8] sm:$0xff]
    %v42 = vld [vmem:[%s5 + $0xd0] sm:$0xff]
    %v43 = vld [vmem:[%s5 + $0xd8] sm:$0xff]
    %v44 = vld [vmem:[%s5 + $0xe0] sm:$0xff]
    %v45 = vld [vmem:[%s5 + $0xe8] sm:$0xff]
    %v46 = vld [vmem:[%s5 + $0xf0] sm:$0xff]
    %v47 = vld [vmem:[%s5 + $0xf8] sm:$0xff]
    %v48 = vld [vmem:[%s5 + $0x100] sm:$0xff]
    %v49 = vld [vmem:[%s5 + $0x108] sm:$0xff]
    %v50 = vld [vmem:[%s5 + $0x110] sm:$0xff]
    %v51 = vld [vmem:[%s5 + $0x118] sm:$0xff]
    %v52 = vld [vmem:[%s5 + $0x120] sm:$0xff]
    %v53 = vld [vmem:[%s5 + $0x128] sm:$0xff]
    %v54 = vld [vmem:[%s5 + $0x130] sm:$0xff]
    %v55 = vld [vmem:[%s5 + $0x138] sm:$0xff]
    %v56 = vld [vmem:[%s5 + $0x140] sm:$0xff]
    %v57 = vld [vmem:[%s5 + $0x148] sm:$0xff]
    %v58 = vld [vmem:[%s5 + $0x150] sm:$0xff]
    %v59 = vld [vmem:[%s5 + $0x158] sm:$0xff]
    %v60 = vld [vmem:[%s5 + $0x160] sm:$0xff]
    %v61 = vld [vmem:[%s5 + $0x168] sm:$0xff]
    %v62 = vld [vmem:[%s5 + $0x170] sm:$0xff]
    %v63 = vld [vmem:[%s5 + $0x178] sm:$0xff]
    %v64 = vld [vmem:[%s5 + $0x180] sm:$0xff]
    %v65 = vld [vmem:[%s5 + $0x188] sm:$0xff]
    %v66 = vld [vmem:[%s5 + $0x190] sm:$0xff]
    %v67 = vld [vmem:[%s5 + $0x198] sm:$0xff]
    %v68 = vld [vmem:[%s5 + $0x1a0] sm:$0xff]
    %v69 = vld [vmem:[%s5 + $0x1a8] sm:$0xff]
    %v70 = vld [vmem:[%s5 + $0x1b0] sm:$0xff]
    %v71 = vld [vmem:[%s5 + $0x1b8] sm:$0xff]
    %v72 = vld [vmem:[%s5 + $0x1c0] sm:$0xff]
    %v73 = vld [vmem:[%s5 + $0x1c8] sm:$0xff]
    %v74 = vld [vmem:[%s5 + $0x1d0] sm:$0xff]
    %v75 = vld [vmem:[%s5 + $0x1d8] sm:$0xff]
    %v76 = vld [vmem:[%s5 + $0x1e0] sm:$0xff]
    %v77 = vld [vmem:[%s5 + $0x1e8] sm:$0xff]
    %v78 = vld [vmem:[%s5 + $0x1f0] sm:$0xff]
    %v79 = vld [vmem:[%s5 + $0x1f8] sm:$0xff]
    %v80 = vld [vmem:[%s5 + $0x200] sm:$0xff]
    %v81 = vld [vmem:[%s5 + $0x208] sm:$0xff]
    %v82 = vld [vmem:[%s5 + $0x210] sm:$0xff]
    %v83 = vld [vmem:[%s5 + $0x218] sm:$0xff]
    %v84 = vld [vmem:[%s5 + $0x220] sm:$0xff]
    %v85 = vld [vmem:[%s5 + $0x228] sm:$0xff]
    %v86 = vld [vmem:[%s5 + $0x230] sm:$0xff]
    %v87 = vld [vmem:[%s5 + $0x238] sm:$0xff]
    %v88 = vld [vmem:[%s5 + $0x280] sm:$0xff]
    %v89 = vld [vmem:[%s0] sm:$0xff]
    %v90 = vld [vmem:[%s0 + $0x8] sm:$0xff]
    %v91 = vld [vmem:[%s0 + $0x10] sm:$0xff]
    %v92 = vld [vmem:[%s0 + $0x18] sm:$0xff]
    %v93 = vld [vmem:[%s1] sm:$0xff]
    %v94 = vld [vmem:[%s1 + $0x8] sm:$0xff]
    %v95 = vld [vmem:[%s2] sm:$0xff]
    %v96 = vld [vmem:[%s2 + $0x8] sm:$0xff]
    %v97 = vld [vmem:[%s2 + $0x10] sm:$0xff]
    %v98 = vld [vmem:[%s2 + $0x18] sm:$0xff]
    %v99 = vld [vmem:[%s2 + $0x20] sm:$0xff]
    %v100 = vld [vmem:[%s2 + $0x28] sm:$0xff]
    %v101 = vld [vmem:[%s2 + $0x30] sm:$0xff]
    %v102 = vld [vmem:[%s2 + $0x38] sm:$0xff]
    %104 = vset.pattern.permute.xlu0 0
    %105 = vperm.xlu0 %104, %v24
    %v106 = vpop.permute.xlu0 %105
    %109 = vset.pattern.permute.xlu0 0
    %110 = vperm.xlu0 %109, %v25
    %v111 = vpop.permute.xlu0 %110
    %114 = vset.pattern.permute.xlu0 0
    %115 = vperm.xlu0 %114, %v26
    %v116 = vpop.permute.xlu0 %115
    %119 = vset.pattern.permute.xlu0 0
    %120 = vperm.xlu0 %119, %v27
    %v121 = vpop.permute.xlu0 %120
    %124 = vset.pattern.permute.xlu0 0
    %125 = vperm.xlu0 %124, %v28
    %v126 = vpop.permute.xlu0 %125
    %129 = vset.pattern.permute.xlu0 0
    %130 = vperm.xlu0 %129, %v29
    %v131 = vpop.permute.xlu0 %130
    %134 = vset.pattern.permute.xlu0 0
    %135 = vperm.xlu0 %134, %v30
    %v136 = vpop.permute.xlu0 %135
    %139 = vset.pattern.permute.xlu0 0
    %140 = vperm.xlu0 %139, %v31
    %v141 = vpop.permute.xlu0 %140
    %vm143 = vcmask 195584
    %v145 = vsel %vm143, %v95, 0
    %v148 = vsel %vm143, %v96, 0
    %v151 = vsel %vm143, %v97, 0
    %v154 = vsel %vm143, %v98, 0
    %v157 = vsel %vm143, %v99, 0
    %v160 = vsel %vm143, %v100, 0
    %v163 = vsel %vm143, %v101, 0
    %v166 = vsel %vm143, %v102, 0
    %168 = vmatprep.subr.mxu0 %v90
    %169 = vmatpush1.msra.mxu0 %v89
    %170 = vmatprep.subr.mxu0 %v92
    %171 = vmatpush1.msra.mxu0 %v91
    %172 = vmatprep.subr.mxu0 %v94
    %173 = vmatpush1.msra.mxu0 %v93
    %174 = vmatprep.subr.mxu0 0.0
    %175 = vmatpush1.msra.mxu0 0.0
    %176 = vmatprep.subr.mxu0 0.0
    %177 = vmatpush1.msra.mxu0 0.0
    %178 = vmatprep.subr.mxu0 0.0
    %179 = vmatpush1.msra.mxu0 0.0
    %180 = vmatprep.subr.mxu0 0.0
    %181 = vmatpush1.msra.mxu0 0.0
    %182 = vmatprep.subr.mxu0 0.0
    %183 = vmatpush1.msra.mxu0 0.0
    %184 = vmatprep.subr.mxu0 0.0
    %185 = vmatpush1.msra.mxu0 0.0
    %186 = vmatprep.subr.mxu0 0.0
    %187 = vmatpush1.msra.mxu0 0.0
    %188 = vmatprep.subr.mxu0 0.0
    %189 = vmatpush1.msra.mxu0 0.0
    %190 = vmatprep.subr.mxu0 0.0
    %191 = vmatpush1.msra.mxu0 0.0
    %192 = vmatprep.subr.mxu0 0.0
    %193 = vmatpush1.msra.mxu0 0.0
    %194 = vmatprep.subr.mxu0 0.0
    %195 = vmatpush1.msra.mxu0 0.0
    %196 = vmatprep.subr.mxu0 0.0
    %197 = vmatpush1.msra.mxu0 0.0
    %198 = vmatprep.subr.mxu0 0.0
    %199 = vmatpush1.msra.mxu0 0.0
    %200 = vmatprep.subr.mxu0 0.0
    %201 = vmatpush1.msra.mxu0 0.0
    %202 = vmatprep.subr.mxu0 0.0
    %203 = vmatpush1.msra.mxu0 0.0
    %204 = vmatprep.subr.mxu0 0.0
    %205 = vmatpush1.msra.mxu0 0.0
    %206 = vmatprep.subr.mxu0 0.0
    %207 = vmatpush1.msra.mxu0 0.0
    %208 = vmatprep.subr.mxu0 0.0
    %209 = vmatpush1.msra.mxu0 0.0
    %210 = vmatprep.subr.mxu0 0.0
    %211 = vmatpush1.msra.mxu0 0.0
    %212 = vmatprep.subr.mxu0 0.0
    %213 = vmatpush1.msra.mxu0 0.0
    %214 = vmatprep.subr.mxu0 0.0
    %215 = vmatpush1.msra.mxu0 0.0
    %216 = vmatprep.subr.mxu0 0.0
    %217 = vmatpush1.msra.mxu0 0.0
    %218 = vmatprep.subr.mxu0 0.0
    %219 = vmatpush1.msra.mxu0 0.0
    %220 = vmatprep.subr.mxu0 0.0
    %221 = vmatpush1.msra.mxu0 0.0
    %222 = vmatprep.subr.mxu0 0.0
    %223 = vmatpush1.msra.mxu0 0.0
    %224 = vmatprep.subr.mxu0 0.0
    %225 = vmatpush1.msra.mxu0 0.0
    %226 = vmatprep.subr.mxu0 0.0
    %227 = vmatpush1.msra.mxu0 0.0
    %228 = vmatprep.subr.mxu0 0.0
    %229 = vmatpush1.msra.mxu0 0.0
    %230 = vmatprep.subr.mxu0 0.0
    %231 = vmatpush1.msra.mxu0 0.0
    %232 = vmatprep.mubr.f32.mxu0 0.0
    %233 = vmatmul.mubr.f32.gmra.mrb[0].mxu0 %v145
    %v234 = vpop.f32.mrb[0].mxu0
    %v235 = vadd.f32 %v106, %v234
    %v236 = vpop.f32.mrb[0].mxu0
    %v237 = vadd.f32 %v106, %v236
    %238 = vmatprep.mubr.f32.mxu0 0.0
    %239 = vmatmul.mubr.f32.gmra.mrb[0].mxu0 %v148
    %v240 = vpop.f32.mrb[0].mxu0
    %v241 = vadd.f32 %v111, %v240
    %v242 = vpop.f32.mrb[0].mxu0
    %v243 = vadd.f32 %v111, %v242
    %244 = vmatprep.mubr.f32.mxu0 0.0
    %245 = vmatmul.mubr.f32.gmra.mrb[0].mxu0 %v151
    %v246 = vpop.f32.mrb[0].mxu0
    %v247 = vadd.f32 %v116, %v246
    %v248 = vpop.f32.mrb[0].mxu0
    %v249 = vadd.f32 %v116, %v248
    %250 = vmatprep.mubr.f32.mxu0 0.0
    %251 = vmatmul.mubr.f32.gmra.mrb[0].mxu0 %v154
    %v252 = vpop.f32.mrb[0].mxu0
    %v253 = vadd.f32 %v121, %v252
    %v254 = vpop.f32.mrb[0].mxu0
    %v255 = vadd.f32 %v121, %v254
    %256 = vmatprep.mubr.f32.mxu0 0.0
    %257 = vmatmul.mubr.f32.gmra.mrb[0].mxu0 %v157
    %v258 = vpop.f32.mrb[0].mxu0
    %v259 = vadd.f32 %v126, %v258
    %v260 = vpop.f32.mrb[0].mxu0
    %v261 = vadd.f32 %v126, %v260
    %262 = vmatprep.mubr.f32.mxu0 0.0
    %263 = vmatmul.mubr.f32.gmra.mrb[0].mxu0 %v160
    %v264 = vpop.f32.mrb[0].mxu0
    %v265 = vadd.f32 %v131, %v264
    %v266 = vpop.f32.mrb[0].mxu0
    %v267 = vadd.f32 %v131, %v266
    %268 = vmatprep.mubr.f32.mxu0 0.0
    %269 = vmatmul.mubr.f32.gmra.mrb[0].mxu0 %v163
    %v270 = vpop.f32.mrb[0].mxu0
    %v271 = vadd.f32 %v136, %v270
    %v272 = vpop.f32.mrb[0].mxu0
    %v273 = vadd.f32 %v136, %v272
    %274 = vmatprep.mubr.f32.mxu0 0.0
    %275 = vmatmul.mubr.f32.gmra.mrb[0].mxu0 %v166
    %v276 = vpop.f32.mrb[0].mxu0
    %v277 = vadd.f32 %v141, %v276
    %v278 = vpop.f32.mrb[0].mxu0
    %v279 = vadd.f32 %v141, %v278
    %280 = vdwg.mxu0
    %v281 = vmax.f32 %v235, 0.0
    %v282 = vmax.f32 %v237, 0.0
    %v283 = vmax.f32 %v241, 0.0
    %v284 = vmax.f32 %v243, 0.0
    %v285 = vmax.f32 %v247, 0.0
    %v286 = vmax.f32 %v249, 0.0
    %v287 = vmax.f32 %v253, 0.0
    %v288 = vmax.f32 %v255, 0.0
    %v289 = vmax.f32 %v259, 0.0
    %v290 = vmax.f32 %v261, 0.0
    %v291 = vmax.f32 %v265, 0.0
    %v292 = vmax.f32 %v267, 0.0
    %v293 = vmax.f32 %v271, 0.0
    %v294 = vmax.f32 %v273, 0.0
    %v295 = vmax.f32 %v277, 0.0
    %v296 = vmax.f32 %v279, 0.0
    %v297 = vld [vmem:[%s3] sm:$0xff]
    %v298 = vld [vmem:[%s3 + $0x8] sm:$0xff]
    %v299 = vld [vmem:[%s3 + $0x10] sm:$0xff]
    %v300 = vld [vmem:[%s3 + $0x18] sm:$0xff]
    %v301 = vld [vmem:[%s3 + $0x20] sm:$0xff]
    %v302 = vld [vmem:[%s3 + $0x28] sm:$0xff]
    %v303 = vld [vmem:[%s3 + $0x30] sm:$0xff]
    %v304 = vld [vmem:[%s3 + $0x38] sm:$0xff]
    %v305 = vld [vmem:[%s3 + $0x40] sm:$0xff]
    %v306 = vld [vmem:[%s3 + $0x48] sm:$0xff]
    %v307 = vld [vmem:[%s3 + $0x50] sm:$0xff]
    %v308 = vld [vmem:[%s3 + $0x58] sm:$0xff]
    %v309 = vld [vmem:[%s3 + $0x60] sm:$0xff]
    %v310 = vld [vmem:[%s3 + $0x68] sm:$0xff]
    %v311 = vld [vmem:[%s3 + $0x70] sm:$0xff]
    %v312 = vld [vmem:[%s3 + $0x78] sm:$0xff]
    %314 = vset.pattern.permute.xlu0 0
    %315 = vperm.xlu0 %314, %v32
    %v316 = vpop.permute.xlu0 %315
    %319 = vset.pattern.permute.xlu0 0
    %320 = vperm.xlu0 %319, %v33
    %v321 = vpop.permute.xlu0 %320
    %324 = vset.pattern.permute.xlu0 0
    %325 = vperm.xlu0 %324, %v34
    %v326 = vpop.permute.xlu0 %325
    %329 = vset.pattern.permute.xlu0 0
    %330 = vperm.xlu0 %329, %v35
    %v331 = vpop.permute.xlu0 %330
    %334 = vset.pattern.permute.xlu0 0
    %335 = vperm.xlu0 %334, %v36
    %v336 = vpop.permute.xlu0 %335
    %339 = vset.pattern.permute.xlu0 0
    %340 = vperm.xlu0 %339, %v37
    %v341 = vpop.permute.xlu0 %340
    %344 = vset.pattern.permute.xlu0 0
    %345 = vperm.xlu0 %344, %v38
    %v346 = vpop.permute.xlu0 %345
    %349 = vset.pattern.permute.xlu0 0
    %350 = vperm.xlu0 %349, %v39
    %v351 = vpop.permute.xlu0 %350
    %354 = vset.pattern.permute.xlu0 0
    %355 = vperm.xlu0 %354, %v40
    %v356 = vpop.permute.xlu0 %355
    %359 = vset.pattern.permute.xlu0 0
    %360 = vperm.xlu0 %359, %v41
    %v361 = vpop.permute.xlu0 %360
    %364 = vset.pattern.permute.xlu0 0
    %365 = vperm.xlu0 %364, %v42
    %v366 = vpop.permute.xlu0 %365
    %369 = vset.pattern.permute.xlu0 0
    %370 = vperm.xlu0 %369, %v43
    %v371 = vpop.permute.xlu0 %370
    %374 = vset.pattern.permute.xlu0 0
    %375 = vperm.xlu0 %374, %v44
    %v376 = vpop.permute.xlu0 %375
    %379 = vset.pattern.permute.xlu0 0
    %380 = vperm.xlu0 %379, %v45
    %v381 = vpop.permute.xlu0 %380
    %384 = vset.pattern.permute.xlu0 0
    %385 = vperm.xlu0 %384, %v46
    %v386 = vpop.permute.xlu0 %385
    %389 = vset.pattern.permute.xlu0 0
    %390 = vperm.xlu0 %389, %v47
    %v391 = vpop.permute.xlu0 %390
    %vm393 = vcmask 523264
    %v395 = vsel %vm393, %v297, 0
    %v398 = vsel %vm393, %v298, 0
    %v401 = vsel %vm393, %v299, 0
    %v404 = vsel %vm393, %v300, 0
    %v407 = vsel %vm393, %v301, 0
    %v410 = vsel %vm393, %v302, 0
    %v413 = vsel %vm393, %v303, 0
    %v416 = vsel %vm393, %v304, 0
    %v419 = vsel %vm393, %v305, 0
    %v422 = vsel %vm393, %v306, 0
    %v425 = vsel %vm393, %v307, 0
    %v428 = vsel %vm393, %v308, 0
    %v431 = vsel %vm393, %v309, 0
    %v434 = vsel %vm393, %v310, 0
    %v437 = vsel %vm393, %v311, 0
    %v440 = vsel %vm393, %v312, 0
    %442 = vmatprep.subr.mxu0 %v282
    %443 = vmatpush1.msra.mxu0 %v281
    %444 = vmatprep.subr.mxu0 %v284
    %445 = vmatpush1.msra.mxu0 %v283
    %446 = vmatprep.subr.mxu0 %v286
    %447 = vmatpush1.msra.mxu0 %v285
    %448 = vmatprep.subr.mxu0 %v288
    %449 = vmatpush1.msra.mxu0 %v287
    %450 = vmatprep.subr.mxu0 %v290
    %451 = vmatpush1.msra.mxu0 %v289
    %452 = vmatprep.subr.mxu0 %v292
    %453 = vmatpush1.msra.mxu0 %v291
    %454 = vmatprep.subr.mxu0 %v294
    %455 = vmatpush1.msra.mxu0 %v293
    %456 = vmatprep.subr.mxu0 %v296
    %457 = vmatpush1.msra.mxu0 %v295
    %458 = vmatprep.subr.mxu0 0.0
    %459 = vmatpush1.msra.mxu0 0.0
    %460 = vmatprep.subr.mxu0 0.0
    %461 = vmatpush1.msra.mxu0 0.0
    %462 = vmatprep.subr.mxu0 0.0
    %463 = vmatpush1.msra.mxu0 0.0
    %464 = vmatprep.subr.mxu0 0.0
    %465 = vmatpush1.msra.mxu0 0.0
    %466 = vmatprep.subr.mxu0 0.0
    %467 = vmatpush1.msra.mxu0 0.0
    %468 = vmatprep.subr.mxu0 0.0
    %469 = vmatpush1.msra.mxu0 0.0
    %470 = vmatprep.subr.mxu0 0.0
    %471 = vmatpush1.msra.mxu0 0.0
    %472 = vmatprep.subr.mxu0 0.0
    %473 = vmatpush1.msra.mxu0 0.0
    %474 = vmatprep.subr.mxu0 0.0
    %475 = vmatpush1.msra.mxu0 0.0
    %476 = vmatprep.subr.mxu0 0.0
    %477 = vmatpush1.msra.mxu0 0.0
    %478 = vmatprep.subr.mxu0 0.0
    %479 = vmatpush1.msra.mxu0 0.0
    %480 = vmatprep.subr.mxu0 0.0
    %481 = vmatpush1.msra.mxu0 0.0
    %482 = vmatprep.subr.mxu0 0.0
    %483 = vmatpush1.msra.mxu0 0.0
    %484 = vmatprep.subr.mxu0 0.0
    %485 = vmatpush1.msra.mxu0 0.0
    %486 = vmatprep.subr.mxu0 0.0
    %487 = vmatpush1.msra.mxu0 0.0
    %488 = vmatprep.subr.mxu0 0.0
    %489 = vmatpush1.msra.mxu0 0.0
    %490 = vmatprep.subr.mxu0 0.0
    %491 = vmatpush1.msra.mxu0 0.0
    %492 = vmatprep.subr.mxu0 0.0
    %493 = vmatpush1.msra.mxu0 0.0
    %494 = vmatprep.subr.mxu0 0.0
    %495 = vmatpush1.msra.mxu0 0.0
    %496 = vmatprep.subr.mxu0 0.0
    %497 = vmatpush1.msra.mxu0 0.0
    %498 = vmatprep.subr.mxu0 0.0
    %499 = vmatpush1.msra.mxu0 0.0
    %500 = vmatprep.subr.mxu0 0.0
    %501 = vmatpush1.msra.mxu0 0.0
    %502 = vmatprep.subr.mxu0 0.0
    %503 = vmatpush1.msra.mxu0 0.0
    %504 = vmatprep.subr.mxu0 0.0
    %505 = vmatpush1.msra.mxu0 0.0
    %506 = vmatprep.mubr.f32.mxu0 0.0
    %507 = vmatmul.mubr.f32.gmra.mrb[0].mxu0 %v395
    %v508 = vpop.f32.mrb[0].mxu0
    %v509 = vadd.f32 %v316, %v508
    %v510 = vpop.f32.mrb[0].mxu0
    %v511 = vadd.f32 %v316, %v510
    %512 = vmatprep.mubr.f32.mxu0 0.0
    %513 = vmatmul.mubr.f32.gmra.mrb[0].mxu0 %v398
    %v514 = vpop.f32.mrb[0].mxu0
    %v515 = vadd.f32 %v321, %v514
    %v516 = vpop.f32.mrb[0].mxu0
    %v517 = vadd.f32 %v321, %v516
    %518 = vmatprep.mubr.f32.mxu0 0.0
    %519 = vmatmul.mubr.f32.gmra.mrb[0].mxu0 %v401
    %v520 = vpop.f32.mrb[0].mxu0
    %v521 = vadd.f32 %v326, %v520
    %v522 = vpop.f32.mrb[0].mxu0
    %v523 = vadd.f32 %v326, %v522
    %524 = vmatprep.mubr.f32.mxu0 0.0
    %525 = vmatmul.mubr.f32.gmra.mrb[0].mxu0 %v404
    %v526 = vpop.f32.mrb[0].mxu0
    %v527 = vadd.f32 %v331, %v526
    %v528 = vpop.f32.mrb[0].mxu0
    %v529 = vadd.f32 %v331, %v528
    %530 = vmatprep.mubr.f32.mxu0 0.0
    %531 = vmatmul.mubr.f32.gmra.mrb[0].mxu0 %v407
    %v532 = vpop.f32.mrb[0].mxu0
    %v533 = vadd.f32 %v336, %v532
    %v534 = vpop.f32.mrb[0].mxu0
    %v535 = vadd.f32 %v336, %v534
    %536 = vmatprep.mubr.f32.mxu0 0.0
    %537 = vmatmul.mubr.f32.gmra.mrb[0].mxu0 %v410
    %v538 = vpop.f32.mrb[0].mxu0
    %v539 = vadd.f32 %v341, %v538
    %v540 = vpop.f32.mrb[0].mxu0
    %v541 = vadd.f32 %v341, %v540
    %542 = vmatprep.mubr.f32.mxu0 0.0
    %543 = vmatmul.mubr.f32.gmra.mrb[0].mxu0 %v413
    %v544 = vpop.f32.mrb[0].mxu0
    %v545 = vadd.f32 %v346, %v544
    %v546 = vpop.f32.mrb[0].mxu0
    %v547 = vadd.f32 %v346, %v546
    %548 = vmatprep.mubr.f32.mxu0 0.0
    %549 = vmatmul.mubr.f32.gmra.mrb[0].mxu0 %v416
    %v550 = vpop.f32.mrb[0].mxu0
    %v551 = vadd.f32 %v351, %v550
    %v552 = vpop.f32.mrb[0].mxu0
    %v553 = vadd.f32 %v351, %v552
    %554 = vmatprep.mubr.f32.mxu0 0.0
    %555 = vmatmul.mubr.f32.gmra.mrb[0].mxu0 %v419
    %v556 = vpop.f32.mrb[0].mxu0
    %v557 = vadd.f32 %v356, %v556
    %v558 = vpop.f32.mrb[0].mxu0
    %v559 = vadd.f32 %v356, %v558
    %560 = vmatprep.mubr.f32.mxu0 0.0
    %561 = vmatmul.mubr.f32.gmra.mrb[0].mxu0 %v422
    %v562 = vpop.f32.mrb[0].mxu0
    %v563 = vadd.f32 %v361, %v562
    %v564 = vpop.f32.mrb[0].mxu0
    %v565 = vadd.f32 %v361, %v564
    %566 = vmatprep.mubr.f32.mxu0 0.0
    %567 = vmatmul.mubr.f32.gmra.mrb[0].mxu0 %v425
    %v568 = vpop.f32.mrb[0].mxu0
    %v569 = vadd.f32 %v366, %v568
    %v570 = vpop.f32.mrb[0].mxu0
    %v571 = vadd.f32 %v366, %v570
    %572 = vmatprep.mubr.f32.mxu0 0.0
    %573 = vmatmul.mubr.f32.gmra.mrb[0].mxu0 %v428
    %v574 = vpop.f32.mrb[0].mxu0
    %v575 = vadd.f32 %v371, %v574
    %v576 = vpop.f32.mrb[0].mxu0
    %v577 = vadd.f32 %v371, %v576
    %578 = vmatprep.mubr.f32.mxu0 0.0
    %579 = vmatmul.mubr.f32.gmra.mrb[0].mxu0 %v431
    %v580 = vpop.f32.mrb[0].mxu0
    %v581 = vadd.f32 %v376, %v580
    %v582 = vpop.f32.mrb[0].mxu0
    %v583 = vadd.f32 %v376, %v582
    %584 = vmatprep.mubr.f32.mxu0 0.0
    %585 = vmatmul.mubr.f32.gmra.mrb[0].mxu0 %v434
    %v586 = vpop.f32.mrb[0].mxu0
    %v587 = vadd.f32 %v381, %v586
    %v588 = vpop.f32.mrb[0].mxu0
    %v589 = vadd.f32 %v381, %v588
    %590 = vmatprep.mubr.f32.mxu0 0.0
    %591 = vmatmul.mubr.f32.gmra.mrb[0].mxu0 %v437
    %v592 = vpop.f32.mrb[0].mxu0
    %v593 = vadd.f32 %v386, %v592
    %v594 = vpop.f32.mrb[0].mxu0
    %v595 = vadd.f32 %v386, %v594
    %596 = vmatprep.mubr.f32.mxu0 0.0
    %597 = vmatmul.mubr.f32.gmra.mrb[0].mxu0 %v440
    %v598 = vpop.f32.mrb[0].mxu0
    %v599 = vadd.f32 %v391, %v598
    %v600 = vpop.f32.mrb[0].mxu0
    %v601 = vadd.f32 %v391, %v600
    %602 = vdwg.mxu0
    %v603 = vmax.f32 %v509, 0.0
    %v604 = vmax.f32 %v511, 0.0
    %v605 = vmax.f32 %v515, 0.0
    %v606 = vmax.f32 %v517, 0.0
    %v607 = vmax.f32 %v521, 0.0
    %v608 = vmax.f32 %v523, 0.0
    %v609 = vmax.f32 %v527, 0.0
    %v610 = vmax.f32 %v529, 0.0
    %v611 = vmax.f32 %v533, 0.0
    %v612 = vmax.f32 %v535, 0.0
    %v613 = vmax.f32 %v539, 0.0
    %v614 = vmax.f32 %v541, 0.0
    %v615 = vmax.f32 %v545, 0.0
    %v616 = vmax.f32 %v547, 0.0
    %v617 = vmax.f32 %v551, 0.0
    %v618 = vmax.f32 %v553, 0.0
    %v619 = vmax.f32 %v557, 0.0
    %v620 = vmax.f32 %v559, 0.0
    %v621 = vmax.f32 %v563, 0.0
    %v622 = vmax.f32 %v565, 0.0
    %v623 = vmax.f32 %v569, 0.0
    %v624 = vmax.f32 %v571, 0.0
    %v625 = vmax.f32 %v575, 0.0
    %v626 = vmax.f32 %v577, 0.0
    %v627 = vmax.f32 %v581, 0.0
    %v628 = vmax.f32 %v583, 0.0
    %v629 = vmax.f32 %v587, 0.0
    %v630 = vmax.f32 %v589, 0.0
    %v631 = vmax.f32 %v593, 0.0
    %v632 = vmax.f32 %v595, 0.0
    %v633 = vmax.f32 %v599, 0.0
    %v634 = vmax.f32 %v601, 0.0
    %s635 = scalar_lea.vmem %s3, 128
    %v636 = vld [vmem:[%s635] sm:$0xff]
    %v637 = vld [vmem:[%s635 + $0x8] sm:$0xff]
    %v638 = vld [vmem:[%s635 + $0x10] sm:$0xff]
    %v639 = vld [vmem:[%s635 + $0x18] sm:$0xff]
    %v640 = vld [vmem:[%s635 + $0x20] sm:$0xff]
    %v641 = vld [vmem:[%s635 + $0x28] sm:$0xff]
    %v642 = vld [vmem:[%s635 + $0x30] sm:$0xff]
    %v643 = vld [vmem:[%s635 + $0x38] sm:$0xff]
    %v644 = vld [vmem:[%s635 + $0x40] sm:$0xff]
    %v645 = vld [vmem:[%s635 + $0x48] sm:$0xff]
    %v646 = vld [vmem:[%s635 + $0x50] sm:$0xff]
    %v647 = vld [vmem:[%s635 + $0x58] sm:$0xff]
    %v648 = vld [vmem:[%s635 + $0x60] sm:$0xff]
    %v649 = vld [vmem:[%s635 + $0x68] sm:$0xff]
    %v650 = vld [vmem:[%s635 + $0x70] sm:$0xff]
    %v651 = vld [vmem:[%s635 + $0x78] sm:$0xff]
    %653 = vset.pattern.permute.xlu0 0
    %654 = vperm.xlu0 %653, %v48
    %v655 = vpop.permute.xlu0 %654
    %658 = vset.pattern.permute.xlu0 0
    %659 = vperm.xlu0 %658, %v49
    %v660 = vpop.permute.xlu0 %659
    %663 = vset.pattern.permute.xlu0 0
    %664 = vperm.xlu0 %663, %v50
    %v665 = vpop.permute.xlu0 %664
    %668 = vset.pattern.permute.xlu0 0
    %669 = vperm.xlu0 %668, %v51
    %v670 = vpop.permute.xlu0 %669
    %673 = vset.pattern.permute.xlu0 0
    %674 = vperm.xlu0 %673, %v52
    %v675 = vpop.permute.xlu0 %674
    %678 = vset.pattern.permute.xlu0 0
    %679 = vperm.xlu0 %678, %v53
    %v680 = vpop.permute.xlu0 %679
    %683 = vset.pattern.permute.xlu0 0
    %684 = vperm.xlu0 %683, %v54
    %v685 = vpop.permute.xlu0 %684
    %688 = vset.pattern.permute.xlu0 0
    %689 = vperm.xlu0 %688, %v55
    %v690 = vpop.permute.xlu0 %689
    %693 = vset.pattern.permute.xlu0 0
    %694 = vperm.xlu0 %693, %v56
    %v695 = vpop.permute.xlu0 %694
    %698 = vset.pattern.permute.xlu0 0
    %699 = vperm.xlu0 %698, %v57
    %v700 = vpop.permute.xlu0 %699
    %703 = vset.pattern.permute.xlu0 0
    %704 = vperm.xlu0 %703, %v58
    %v705 = vpop.permute.xlu0 %704
    %708 = vset.pattern.permute.xlu0 0
    %709 = vperm.xlu0 %708, %v59
    %v710 = vpop.permute.xlu0 %709
    %713 = vset.pattern.permute.xlu0 0
    %714 = vperm.xlu0 %713, %v60
    %v715 = vpop.permute.xlu0 %714
    %718 = vset.pattern.permute.xlu0 0
    %719 = vperm.xlu0 %718, %v61
    %v720 = vpop.permute.xlu0 %719
    %723 = vset.pattern.permute.xlu0 0
    %724 = vperm.xlu0 %723, %v62
    %v725 = vpop.permute.xlu0 %724
    %728 = vset.pattern.permute.xlu0 0
    %729 = vperm.xlu0 %728, %v63
    %v730 = vpop.permute.xlu0 %729
    %732 = vmatprep.subr.mxu0 %v604
    %733 = vmatpush1.msra.mxu0 %v603
    %734 = vmatprep.subr.mxu0 %v606
    %735 = vmatpush1.msra.mxu0 %v605
    %736 = vmatprep.subr.mxu0 %v608
    %737 = vmatpush1.msra.mxu0 %v607
    %738 = vmatprep.subr.mxu0 %v610
    %739 = vmatpush1.msra.mxu0 %v609
    %740 = vmatprep.subr.mxu0 %v612
    %741 = vmatpush1.msra.mxu0 %v611
    %742 = vmatprep.subr.mxu0 %v614
    %743 = vmatpush1.msra.mxu0 %v613
    %744 = vmatprep.subr.mxu0 %v616
    %745 = vmatpush1.msra.mxu0 %v615
    %746 = vmatprep.subr.mxu0 %v618
    %747 = vmatpush1.msra.mxu0 %v617
    %748 = vmatprep.subr.mxu0 %v620
    %749 = vmatpush1.msra.mxu0 %v619
    %750 = vmatprep.subr.mxu0 %v622
    %751 = vmatpush1.msra.mxu0 %v621
    %752 = vmatprep.subr.mxu0 %v624
    %753 = vmatpush1.msra.mxu0 %v623
    %754 = vmatprep.subr.mxu0 %v626
    %755 = vmatpush1.msra.mxu0 %v625
    %756 = vmatprep.subr.mxu0 %v628
    %757 = vmatpush1.msra.mxu0 %v627
    %758 = vmatprep.subr.mxu0 %v630
    %759 = vmatpush1.msra.mxu0 %v629
    %760 = vmatprep.subr.mxu0 %v632
    %761 = vmatpush1.msra.mxu0 %v631
    %762 = vmatprep.subr.mxu0 %v634
    %763 = vmatpush1.msra.mxu0 %v633
    %764 = vmatprep.subr.mxu0 0.0
    %765 = vmatpush1.msra.mxu0 0.0
    %766 = vmatprep.subr.mxu0 0.0
    %767 = vmatpush1.msra.mxu0 0.0
    %768 = vmatprep.subr.mxu0 0.0
    %769 = vmatpush1.msra.mxu0 0.0
    %770 = vmatprep.subr.mxu0 0.0
    %771 = vmatpush1.msra.mxu0 0.0
    %772 = vmatprep.subr.mxu0 0.0
    %773 = vmatpush1.msra.mxu0 0.0
    %774 = vmatprep.subr.mxu0 0.0
    %775 = vmatpush1.msra.mxu0 0.0
    %776 = vmatprep.subr.mxu0 0.0
    %777 = vmatpush1.msra.mxu0 0.0
    %778 = vmatprep.subr.mxu0 0.0
    %779 = vmatpush1.msra.mxu0 0.0
    %780 = vmatprep.subr.mxu0 0.0
    %781 = vmatpush1.msra.mxu0 0.0
    %782 = vmatprep.subr.mxu0 0.0
    %783 = vmatpush1.msra.mxu0 0.0
    %784 = vmatprep.subr.mxu0 0.0
    %785 = vmatpush1.msra.mxu0 0.0
    %786 = vmatprep.subr.mxu0 0.0
    %787 = vmatpush1.msra.mxu0 0.0
    %788 = vmatprep.subr.mxu0 0.0
    %789 = vmatpush1.msra.mxu0 0.0
    %790 = vmatprep.subr.mxu0 0.0
    %791 = vmatpush1.msra.mxu0 0.0
    %792 = vmatprep.subr.mxu0 0.0
    %793 = vmatpush1.msra.mxu0 0.0
    %794 = vmatprep.subr.mxu0 0.0
    %795 = vmatpush1.msra.mxu0 0.0
    %796 = vmatprep.mubr.f32.mxu0 0.0
    %797 = vmatmul.mubr.f32.gmra.mrb[0].mxu0 %v636
    %v798 = vpop.f32.mrb[0].mxu0
    %v799 = vadd.f32 %v655, %v798
    %v800 = vpop.f32.mrb[0].mxu0
    %v801 = vadd.f32 %v655, %v800
    %802 = vmatprep.mubr.f32.mxu0 0.0
    %803 = vmatmul.mubr.f32.gmra.mrb[0].mxu0 %v637
    %v804 = vpop.f32.mrb[0].mxu0
    %v805 = vadd.f32 %v660, %v804
    %v806 = vpop.f32.mrb[0].mxu0
    %v807 = vadd.f32 %v660, %v806
    %808 = vmatprep.mubr.f32.mxu0 0.0
    %809 = vmatmul.mubr.f32.gmra.mrb[0].mxu0 %v638
    %v810 = vpop.f32.mrb[0].mxu0
    %v811 = vadd.f32 %v665, %v810
    %v812 = vpop.f32.mrb[0].mxu0
    %v813 = vadd.f32 %v665, %v812
    %814 = vmatprep.mubr.f32.mxu0 0.0
    %815 = vmatmul.mubr.f32.gmra.mrb[0].mxu0 %v639
    %v816 = vpop.f32.mrb[0].mxu0
    %v817 = vadd.f32 %v670, %v816
    %v818 = vpop.f32.mrb[0].mxu0
    %v819 = vadd.f32 %v670, %v818
    %820 = vmatprep.mubr.f32.mxu0 0.0
    %821 = vmatmul.mubr.f32.gmra.mrb[0].mxu0 %v640
    %v822 = vpop.f32.mrb[0].mxu0
    %v823 = vadd.f32 %v675, %v822
    %v824 = vpop.f32.mrb[0].mxu0
    %v825 = vadd.f32 %v675, %v824
    %826 = vmatprep.mubr.f32.mxu0 0.0
    %827 = vmatmul.mubr.f32.gmra.mrb[0].mxu0 %v641
    %v828 = vpop.f32.mrb[0].mxu0
    %v829 = vadd.f32 %v680, %v828
    %v830 = vpop.f32.mrb[0].mxu0
    %v831 = vadd.f32 %v680, %v830
    %832 = vmatprep.mubr.f32.mxu0 0.0
    %833 = vmatmul.mubr.f32.gmra.mrb[0].mxu0 %v642
    %v834 = vpop.f32.mrb[0].mxu0
    %v835 = vadd.f32 %v685, %v834
    %v836 = vpop.f32.mrb[0].mxu0
    %v837 = vadd.f32 %v685, %v836
    %838 = vmatprep.mubr.f32.mxu0 0.0
    %839 = vmatmul.mubr.f32.gmra.mrb[0].mxu0 %v643
    %v840 = vpop.f32.mrb[0].mxu0
    %v841 = vadd.f32 %v690, %v840
    %v842 = vpop.f32.mrb[0].mxu0
    %v843 = vadd.f32 %v690, %v842
    %844 = vmatprep.mubr.f32.mxu0 0.0
    %845 = vmatmul.mubr.f32.gmra.mrb[0].mxu0 %v644
    %v846 = vpop.f32.mrb[0].mxu0
    %v847 = vadd.f32 %v695, %v846
    %v848 = vpop.f32.mrb[0].mxu0
    %v849 = vadd.f32 %v695, %v848
    %850 = vmatprep.mubr.f32.mxu0 0.0
    %851 = vmatmul.mubr.f32.gmra.mrb[0].mxu0 %v645
    %v852 = vpop.f32.mrb[0].mxu0
    %v853 = vadd.f32 %v700, %v852
    %v854 = vpop.f32.mrb[0].mxu0
    %v855 = vadd.f32 %v700, %v854
    %856 = vmatprep.mubr.f32.mxu0 0.0
    %857 = vmatmul.mubr.f32.gmra.mrb[0].mxu0 %v646
    %v858 = vpop.f32.mrb[0].mxu0
    %v859 = vadd.f32 %v705, %v858
    %v860 = vpop.f32.mrb[0].mxu0
    %v861 = vadd.f32 %v705, %v860
    %862 = vmatprep.mubr.f32.mxu0 0.0
    %863 = vmatmul.mubr.f32.gmra.mrb[0].mxu0 %v647
    %v864 = vpop.f32.mrb[0].mxu0
    %v865 = vadd.f32 %v710, %v864
    %v866 = vpop.f32.mrb[0].mxu0
    %v867 = vadd.f32 %v710, %v866
    %868 = vmatprep.mubr.f32.mxu0 0.0
    %869 = vmatmul.mubr.f32.gmra.mrb[0].mxu0 %v648
    %v870 = vpop.f32.mrb[0].mxu0
    %v871 = vadd.f32 %v715, %v870
    %v872 = vpop.f32.mrb[0].mxu0
    %v873 = vadd.f32 %v715, %v872
    %874 = vmatprep.mubr.f32.mxu0 0.0
    %875 = vmatmul.mubr.f32.gmra.mrb[0].mxu0 %v649
    %v876 = vpop.f32.mrb[0].mxu0
    %v877 = vadd.f32 %v720, %v876
    %v878 = vpop.f32.mrb[0].mxu0
    %v879 = vadd.f32 %v720, %v878
    %880 = vmatprep.mubr.f32.mxu0 0.0
    %881 = vmatmul.mubr.f32.gmra.mrb[0].mxu0 %v650
    %v882 = vpop.f32.mrb[0].mxu0
    %v883 = vadd.f32 %v725, %v882
    %v884 = vpop.f32.mrb[0].mxu0
    %v885 = vadd.f32 %v725, %v884
    %886 = vmatprep.mubr.f32.mxu0 0.0
    %887 = vmatmul.mubr.f32.gmra.mrb[0].mxu0 %v651
    %v888 = vpop.f32.mrb[0].mxu0
    %v889 = vadd.f32 %v730, %v888
    %v890 = vpop.f32.mrb[0].mxu0
    %v891 = vadd.f32 %v730, %v890
    %892 = vdwg.mxu0
    %v893 = vmax.f32 %v799, 0.0
    %v894 = vmax.f32 %v801, 0.0
    %v895 = vmax.f32 %v805, 0.0
    %v896 = vmax.f32 %v807, 0.0
    %v897 = vmax.f32 %v811, 0.0
    %v898 = vmax.f32 %v813, 0.0
    %v899 = vmax.f32 %v817, 0.0
    %v900 = vmax.f32 %v819, 0.0
    %v901 = vmax.f32 %v823, 0.0
    %v902 = vmax.f32 %v825, 0.0
    %v903 = vmax.f32 %v829, 0.0
    %v904 = vmax.f32 %v831, 0.0
    %v905 = vmax.f32 %v835, 0.0
    %v906 = vmax.f32 %v837, 0.0
    %v907 = vmax.f32 %v841, 0.0
    %v908 = vmax.f32 %v843, 0.0
    %v909 = vmax.f32 %v847, 0.0
    %v910 = vmax.f32 %v849, 0.0
    %v911 = vmax.f32 %v853, 0.0
    %v912 = vmax.f32 %v855, 0.0
    %v913 = vmax.f32 %v859, 0.0
    %v914 = vmax.f32 %v861, 0.0
    %v915 = vmax.f32 %v865, 0.0
    %v916 = vmax.f32 %v867, 0.0
    %v917 = vmax.f32 %v871, 0.0
    %v918 = vmax.f32 %v873, 0.0
    %v919 = vmax.f32 %v877, 0.0
    %v920 = vmax.f32 %v879, 0.0
    %v921 = vmax.f32 %v883, 0.0
    %v922 = vmax.f32 %v885, 0.0
    %v923 = vmax.f32 %v889, 0.0
    %v924 = vmax.f32 %v891, 0.0
    %s925 = scalar_lea.vmem %s3, 256
    %v926 = vld [vmem:[%s925] sm:$0xff]
    %v927 = vld [vmem:[%s925 + $0x8] sm:$0xff]
    %v928 = vld [vmem:[%s925 + $0x10] sm:$0xff]
    %v929 = vld [vmem:[%s925 + $0x18] sm:$0xff]
    %v930 = vld [vmem:[%s925 + $0x20] sm:$0xff]
    %v931 = vld [vmem:[%s925 + $0x28] sm:$0xff]
    %v932 = vld [vmem:[%s925 + $0x30] sm:$0xff]
    %v933 = vld [vmem:[%s925 + $0x38] sm:$0xff]
    %v934 = vld [vmem:[%s925 + $0x40] sm:$0xff]
    %v935 = vld [vmem:[%s925 + $0x48] sm:$0xff]
    %v936 = vld [vmem:[%s925 + $0x50] sm:$0xff]
    %v937 = vld [vmem:[%s925 + $0x58] sm:$0xff]
    %v938 = vld [vmem:[%s925 + $0x60] sm:$0xff]
    %v939 = vld [vmem:[%s925 + $0x68] sm:$0xff]
    %v940 = vld [vmem:[%s925 + $0x70] sm:$0xff]
    %v941 = vld [vmem:[%s925 + $0x78] sm:$0xff]
    %943 = vset.pattern.permute.xlu0 0
    %944 = vperm.xlu0 %943, %v64
    %v945 = vpop.permute.xlu0 %944
    %948 = vset.pattern.permute.xlu0 0
    %949 = vperm.xlu0 %948, %v65
    %v950 = vpop.permute.xlu0 %949
    %953 = vset.pattern.permute.xlu0 0
    %954 = vperm.xlu0 %953, %v66
    %v955 = vpop.permute.xlu0 %954
    %958 = vset.pattern.permute.xlu0 0
    %959 = vperm.xlu0 %958, %v67
    %v960 = vpop.permute.xlu0 %959
    %963 = vset.pattern.permute.xlu0 0
    %964 = vperm.xlu0 %963, %v68
    %v965 = vpop.permute.xlu0 %964
    %968 = vset.pattern.permute.xlu0 0
    %969 = vperm.xlu0 %968, %v69
    %v970 = vpop.permute.xlu0 %969
    %973 = vset.pattern.permute.xlu0 0
    %974 = vperm.xlu0 %973, %v70
    %v975 = vpop.permute.xlu0 %974
    %978 = vset.pattern.permute.xlu0 0
    %979 = vperm.xlu0 %978, %v71
    %v980 = vpop.permute.xlu0 %979
    %983 = vset.pattern.permute.xlu0 0
    %984 = vperm.xlu0 %983, %v72
    %v985 = vpop.permute.xlu0 %984
    %988 = vset.pattern.permute.xlu0 0
    %989 = vperm.xlu0 %988, %v73
    %v990 = vpop.permute.xlu0 %989
    %993 = vset.pattern.permute.xlu0 0
    %994 = vperm.xlu0 %993, %v74
    %v995 = vpop.permute.xlu0 %994
    %998 = vset.pattern.permute.xlu0 0
    %999 = vperm.xlu0 %998, %v75
    %v1000 = vpop.permute.xlu0 %999
    %1003 = vset.pattern.permute.xlu0 0
    %1004 = vperm.xlu0 %1003, %v76
    %v1005 = vpop.permute.xlu0 %1004
    %1008 = vset.pattern.permute.xlu0 0
    %1009 = vperm.xlu0 %1008, %v77
    %v1010 = vpop.permute.xlu0 %1009
    %1013 = vset.pattern.permute.xlu0 0
    %1014 = vperm.xlu0 %1013, %v78
    %v1015 = vpop.permute.xlu0 %1014
    %1018 = vset.pattern.permute.xlu0 0
    %1019 = vperm.xlu0 %1018, %v79
    %v1020 = vpop.permute.xlu0 %1019
    %1022 = vmatprep.subr.mxu0 %v894
    %1023 = vmatpush1.msra.mxu0 %v893
    %1024 = vmatprep.subr.mxu0 %v896
    %1025 = vmatpush1.msra.mxu0 %v895
    %1026 = vmatprep.subr.mxu0 %v898
    %1027 = vmatpush1.msra.mxu0 %v897
    %1028 = vmatprep.subr.mxu0 %v900
    %1029 = vmatpush1.msra.mxu0 %v899
    %1030 = vmatprep.subr.mxu0 %v902
    %1031 = vmatpush1.msra.mxu0 %v901
    %1032 = vmatprep.subr.mxu0 %v904
    %1033 = vmatpush1.msra.mxu0 %v903
    %1034 = vmatprep.subr.mxu0 %v906
    %1035 = vmatpush1.msra.mxu0 %v905
    %1036 = vmatprep.subr.mxu0 %v908
    %1037 = vmatpush1.msra.mxu0 %v907
    %1038 = vmatprep.subr.mxu0 %v910
    %1039 = vmatpush1.msra.mxu0 %v909
    %1040 = vmatprep.subr.mxu0 %v912
    %1041 = vmatpush1.msra.mxu0 %v911
    %1042 = vmatprep.subr.mxu0 %v914
    %1043 = vmatpush1.msra.mxu0 %v913
    %1044 = vmatprep.subr.mxu0 %v916
    %1045 = vmatpush1.msra.mxu0 %v915
    %1046 = vmatprep.subr.mxu0 %v918
    %1047 = vmatpush1.msra.mxu0 %v917
    %1048 = vmatprep.subr.mxu0 %v920
    %1049 = vmatpush1.msra.mxu0 %v919
    %1050 = vmatprep.subr.mxu0 %v922
    %1051 = vmatpush1.msra.mxu0 %v921
    %1052 = vmatprep.subr.mxu0 %v924
    %1053 = vmatpush1.msra.mxu0 %v923
    %1054 = vmatprep.subr.mxu0 0.0
    %1055 = vmatpush1.msra.mxu0 0.0
    %1056 = vmatprep.subr.mxu0 0.0
    %1057 = vmatpush1.msra.mxu0 0.0
    %1058 = vmatprep.subr.mxu0 0.0
    %1059 = vmatpush1.msra.mxu0 0.0
    %1060 = vmatprep.subr.mxu0 0.0
    %1061 = vmatpush1.msra.mxu0 0.0
    %1062 = vmatprep.subr.mxu0 0.0
    %1063 = vmatpush1.msra.mxu0 0.0
    %1064 = vmatprep.subr.mxu0 0.0
    %1065 = vmatpush1.msra.mxu0 0.0
    %1066 = vmatprep.subr.mxu0 0.0
    %1067 = vmatpush1.msra.mxu0 0.0
    %1068 = vmatprep.subr.mxu0 0.0
    %1069 = vmatpush1.msra.mxu0 0.0
    %1070 = vmatprep.subr.mxu0 0.0
    %1071 = vmatpush1.msra.mxu0 0.0
    %1072 = vmatprep.subr.mxu0 0.0
    %1073 = vmatpush1.msra.mxu0 0.0
    %1074 = vmatprep.subr.mxu0 0.0
    %1075 = vmatpush1.msra.mxu0 0.0
    %1076 = vmatprep.subr.mxu0 0.0
    %1077 = vmatpush1.msra.mxu0 0.0
    %1078 = vmatprep.subr.mxu0 0.0
    %1079 = vmatpush1.msra.mxu0 0.0
    %1080 = vmatprep.subr.mxu0 0.0
    %1081 = vmatpush1.msra.mxu0 0.0
    %1082 = vmatprep.subr.mxu0 0.0
    %1083 = vmatpush1.msra.mxu0 0.0
    %1084 = vmatprep.subr.mxu0 0.0
    %1085 = vmatpush1.msra.mxu0 0.0
    %1086 = vmatprep.mubr.f32.mxu0 0.0
    %1087 = vmatmul.mubr.f32.gmra.mrb[0].mxu0 %v926
    %v1088 = vpop.f32.mrb[0].mxu0
    %v1089 = vadd.f32 %v945, %v1088
    %v1090 = vpop.f32.mrb[0].mxu0
    %v1091 = vadd.f32 %v945, %v1090
    %1092 = vmatprep.mubr.f32.mxu0 0.0
    %1093 = vmatmul.mubr.f32.gmra.mrb[0].mxu0 %v927
    %v1094 = vpop.f32.mrb[0].mxu0
    %v1095 = vadd.f32 %v950, %v1094
    %v1096 = vpop.f32.mrb[0].mxu0
    %v1097 = vadd.f32 %v950, %v1096
    %1098 = vmatprep.mubr.f32.mxu0 0.0
    %1099 = vmatmul.mubr.f32.gmra.mrb[0].mxu0 %v928
    %v1100 = vpop.f32.mrb[0].mxu0
    %v1101 = vadd.f32 %v955, %v1100
    %v1102 = vpop.f32.mrb[0].mxu0
    %v1103 = vadd.f32 %v955, %v1102
    %1104 = vmatprep.mubr.f32.mxu0 0.0
    %1105 = vmatmul.mubr.f32.gmra.mrb[0].mxu0 %v929
    %v1106 = vpop.f32.mrb[0].mxu0
    %v1107 = vadd.f32 %v960, %v1106
    %v1108 = vpop.f32.mrb[0].mxu0
    %v1109 = vadd.f32 %v960, %v1108
    %1110 = vmatprep.mubr.f32.mxu0 0.0
    %1111 = vmatmul.mubr.f32.gmra.mrb[0].mxu0 %v930
    %v1112 = vpop.f32.mrb[0].mxu0
    %v1113 = vadd.f32 %v965, %v1112
    %v1114 = vpop.f32.mrb[0].mxu0
    %v1115 = vadd.f32 %v965, %v1114
    %1116 = vmatprep.mubr.f32.mxu0 0.0
    %1117 = vmatmul.mubr.f32.gmra.mrb[0].mxu0 %v931
    %v1118 = vpop.f32.mrb[0].mxu0
    %v1119 = vadd.f32 %v970, %v1118
    %v1120 = vpop.f32.mrb[0].mxu0
    %v1121 = vadd.f32 %v970, %v1120
    %1122 = vmatprep.mubr.f32.mxu0 0.0
    %1123 = vmatmul.mubr.f32.gmra.mrb[0].mxu0 %v932
    %v1124 = vpop.f32.mrb[0].mxu0
    %v1125 = vadd.f32 %v975, %v1124
    %v1126 = vpop.f32.mrb[0].mxu0
    %v1127 = vadd.f32 %v975, %v1126
    %1128 = vmatprep.mubr.f32.mxu0 0.0
    %1129 = vmatmul.mubr.f32.gmra.mrb[0].mxu0 %v933
    %v1130 = vpop.f32.mrb[0].mxu0
    %v1131 = vadd.f32 %v980, %v1130
    %v1132 = vpop.f32.mrb[0].mxu0
    %v1133 = vadd.f32 %v980, %v1132
    %1134 = vmatprep.mubr.f32.mxu0 0.0
    %1135 = vmatmul.mubr.f32.gmra.mrb[0].mxu0 %v934
    %v1136 = vpop.f32.mrb[0].mxu0
    %v1137 = vadd.f32 %v985, %v1136
    %v1138 = vpop.f32.mrb[0].mxu0
    %v1139 = vadd.f32 %v985, %v1138
    %1140 = vmatprep.mubr.f32.mxu0 0.0
    %1141 = vmatmul.mubr.f32.gmra.mrb[0].mxu0 %v935
    %v1142 = vpop.f32.mrb[0].mxu0
    %v1143 = vadd.f32 %v990, %v1142
    %v1144 = vpop.f32.mrb[0].mxu0
    %v1145 = vadd.f32 %v990, %v1144
    %1146 = vmatprep.mubr.f32.mxu0 0.0
    %1147 = vmatmul.mubr.f32.gmra.mrb[0].mxu0 %v936
    %v1148 = vpop.f32.mrb[0].mxu0
    %v1149 = vadd.f32 %v995, %v1148
    %v1150 = vpop.f32.mrb[0].mxu0
    %v1151 = vadd.f32 %v995, %v1150
    %1152 = vmatprep.mubr.f32.mxu0 0.0
    %1153 = vmatmul.mubr.f32.gmra.mrb[0].mxu0 %v937
    %v1154 = vpop.f32.mrb[0].mxu0
    %v1155 = vadd.f32 %v1000, %v1154
    %v1156 = vpop.f32.mrb[0].mxu0
    %v1157 = vadd.f32 %v1000, %v1156
    %1158 = vmatprep.mubr.f32.mxu0 0.0
    %1159 = vmatmul.mubr.f32.gmra.mrb[0].mxu0 %v938
    %v1160 = vpop.f32.mrb[0].mxu0
    %v1161 = vadd.f32 %v1005, %v1160
    %v1162 = vpop.f32.mrb[0].mxu0
    %v1163 = vadd.f32 %v1005, %v1162
    %1164 = vmatprep.mubr.f32.mxu0 0.0
    %1165 = vmatmul.mubr.f32.gmra.mrb[0].mxu0 %v939
    %v1166 = vpop.f32.mrb[0].mxu0
    %v1167 = vadd.f32 %v1010, %v1166
    %v1168 = vpop.f32.mrb[0].mxu0
    %v1169 = vadd.f32 %v1010, %v1168
    %1170 = vmatprep.mubr.f32.mxu0 0.0
    %1171 = vmatmul.mubr.f32.gmra.mrb[0].mxu0 %v940
    %v1172 = vpop.f32.mrb[0].mxu0
    %v1173 = vadd.f32 %v1015, %v1172
    %v1174 = vpop.f32.mrb[0].mxu0
    %v1175 = vadd.f32 %v1015, %v1174
    %1176 = vmatprep.mubr.f32.mxu0 0.0
    %1177 = vmatmul.mubr.f32.gmra.mrb[0].mxu0 %v941
    %v1178 = vpop.f32.mrb[0].mxu0
    %v1179 = vadd.f32 %v1020, %v1178
    %v1180 = vpop.f32.mrb[0].mxu0
    %v1181 = vadd.f32 %v1020, %v1180
    %1182 = vdwg.mxu0
    %v1183 = vmax.f32 %v1089, 0.0
    %v1184 = vmax.f32 %v1091, 0.0
    %v1185 = vmax.f32 %v1095, 0.0
    %v1186 = vmax.f32 %v1097, 0.0
    %v1187 = vmax.f32 %v1101, 0.0
    %v1188 = vmax.f32 %v1103, 0.0
    %v1189 = vmax.f32 %v1107, 0.0
    %v1190 = vmax.f32 %v1109, 0.0
    %v1191 = vmax.f32 %v1113, 0.0
    %v1192 = vmax.f32 %v1115, 0.0
    %v1193 = vmax.f32 %v1119, 0.0
    %v1194 = vmax.f32 %v1121, 0.0
    %v1195 = vmax.f32 %v1125, 0.0
    %v1196 = vmax.f32 %v1127, 0.0
    %v1197 = vmax.f32 %v1131, 0.0
    %v1198 = vmax.f32 %v1133, 0.0
    %v1199 = vmax.f32 %v1137, 0.0
    %v1200 = vmax.f32 %v1139, 0.0
    %v1201 = vmax.f32 %v1143, 0.0
    %v1202 = vmax.f32 %v1145, 0.0
    %v1203 = vmax.f32 %v1149, 0.0
    %v1204 = vmax.f32 %v1151, 0.0
    %v1205 = vmax.f32 %v1155, 0.0
    %v1206 = vmax.f32 %v1157, 0.0
    %v1207 = vmax.f32 %v1161, 0.0
    %v1208 = vmax.f32 %v1163, 0.0
    %v1209 = vmax.f32 %v1167, 0.0
    %v1210 = vmax.f32 %v1169, 0.0
    %v1211 = vmax.f32 %v1173, 0.0
    %v1212 = vmax.f32 %v1175, 0.0
    %v1213 = vmax.f32 %v1179, 0.0
    %v1214 = vmax.f32 %v1181, 0.0
    %v1215 = vld [vmem:[%s4] sm:$0xff]
    %v1216 = vld [vmem:[%s4 + $0x8] sm:$0xff]
    %v1217 = vld [vmem:[%s4 + $0x10] sm:$0xff]
    %v1218 = vld [vmem:[%s4 + $0x18] sm:$0xff]
    %v1219 = vld [vmem:[%s4 + $0x20] sm:$0xff]
    %v1220 = vld [vmem:[%s4 + $0x28] sm:$0xff]
    %v1221 = vld [vmem:[%s4 + $0x30] sm:$0xff]
    %v1222 = vld [vmem:[%s4 + $0x38] sm:$0xff]
    %v1223 = vld [vmem:[%s4 + $0x40] sm:$0xff]
    %1225 = vset.pattern.permute.xlu0 0
    %1226 = vperm.xlu0 %1225, %v80
    %v1227 = vpop.permute.xlu0 %1226
    %1230 = vset.pattern.permute.xlu0 0
    %1231 = vperm.xlu0 %1230, %v81
    %v1232 = vpop.permute.xlu0 %1231
    %1235 = vset.pattern.permute.xlu0 0
    %1236 = vperm.xlu0 %1235, %v82
    %v1237 = vpop.permute.xlu0 %1236
    %1240 = vset.pattern.permute.xlu0 0
    %1241 = vperm.xlu0 %1240, %v83
    %v1242 = vpop.permute.xlu0 %1241
    %1245 = vset.pattern.permute.xlu0 0
    %1246 = vperm.xlu0 %1245, %v84
    %v1247 = vpop.permute.xlu0 %1246
    %1250 = vset.pattern.permute.xlu0 0
    %1251 = vperm.xlu0 %1250, %v85
    %v1252 = vpop.permute.xlu0 %1251
    %1255 = vset.pattern.permute.xlu0 0
    %1256 = vperm.xlu0 %1255, %v86
    %v1257 = vpop.permute.xlu0 %1256
    %1260 = vset.pattern.permute.xlu0 0
    %1261 = vperm.xlu0 %1260, %v87
    %v1262 = vpop.permute.xlu0 %1261
    %1264 = vmatprep.subr.mxu0 %v1184
    %1265 = vmatpush1.msra.mxu0 %v1183
    %1266 = vmatprep.subr.mxu0 %v1186
    %1267 = vmatpush1.msra.mxu0 %v1185
    %1268 = vmatprep.subr.mxu0 %v1188
    %1269 = vmatpush1.msra.mxu0 %v1187
    %1270 = vmatprep.subr.mxu0 %v1190
    %1271 = vmatpush1.msra.mxu0 %v1189
    %1272 = vmatprep.subr.mxu0 %v1192
    %1273 = vmatpush1.msra.mxu0 %v1191
    %1274 = vmatprep.subr.mxu0 %v1194
    %1275 = vmatpush1.msra.mxu0 %v1193
    %1276 = vmatprep.subr.mxu0 %v1196
    %1277 = vmatpush1.msra.mxu0 %v1195
    %1278 = vmatprep.subr.mxu0 %v1198
    %1279 = vmatpush1.msra.mxu0 %v1197
    %1280 = vmatprep.subr.mxu0 %v1200
    %1281 = vmatpush1.msra.mxu0 %v1199
    %1282 = vmatprep.subr.mxu0 %v1202
    %1283 = vmatpush1.msra.mxu0 %v1201
    %1284 = vmatprep.subr.mxu0 %v1204
    %1285 = vmatpush1.msra.mxu0 %v1203
    %1286 = vmatprep.subr.mxu0 %v1206
    %1287 = vmatpush1.msra.mxu0 %v1205
    %1288 = vmatprep.subr.mxu0 %v1208
    %1289 = vmatpush1.msra.mxu0 %v1207
    %1290 = vmatprep.subr.mxu0 %v1210
    %1291 = vmatpush1.msra.mxu0 %v1209
    %1292 = vmatprep.subr.mxu0 %v1212
    %1293 = vmatpush1.msra.mxu0 %v1211
    %1294 = vmatprep.subr.mxu0 %v1214
    %1295 = vmatpush1.msra.mxu0 %v1213
    %1296 = vmatprep.subr.mxu0 0.0
    %1297 = vmatpush1.msra.mxu0 0.0
    %1298 = vmatprep.subr.mxu0 0.0
    %1299 = vmatpush1.msra.mxu0 0.0
    %1300 = vmatprep.subr.mxu0 0.0
    %1301 = vmatpush1.msra.mxu0 0.0
    %1302 = vmatprep.subr.mxu0 0.0
    %1303 = vmatpush1.msra.mxu0 0.0
    %1304 = vmatprep.subr.mxu0 0.0
    %1305 = vmatpush1.msra.mxu0 0.0
    %1306 = vmatprep.subr.mxu0 0.0
    %1307 = vmatpush1.msra.mxu0 0.0
    %1308 = vmatprep.subr.mxu0 0.0
    %1309 = vmatpush1.msra.mxu0 0.0
    %1310 = vmatprep.subr.mxu0 0.0
    %1311 = vmatpush1.msra.mxu0 0.0
    %1312 = vmatprep.subr.mxu0 0.0
    %1313 = vmatpush1.msra.mxu0 0.0
    %1314 = vmatprep.subr.mxu0 0.0
    %1315 = vmatpush1.msra.mxu0 0.0
    %1316 = vmatprep.subr.mxu0 0.0
    %1317 = vmatpush1.msra.mxu0 0.0
    %1318 = vmatprep.subr.mxu0 0.0
    %1319 = vmatpush1.msra.mxu0 0.0
    %1320 = vmatprep.subr.mxu0 0.0
    %1321 = vmatpush1.msra.mxu0 0.0
    %1322 = vmatprep.subr.mxu0 0.0
    %1323 = vmatpush1.msra.mxu0 0.0
    %1324 = vmatprep.subr.mxu0 0.0
    %1325 = vmatpush1.msra.mxu0 0.0
    %1326 = vmatprep.subr.mxu0 0.0
    %1327 = vmatpush1.msra.mxu0 0.0
    %1328 = vmatprep.mubr.f32.mxu0 0.0
    %1329 = vmatmul.mubr.f32.gmra.mrb[0].mxu0 %v1215
    %v1330 = vpop.f32.mrb[0].mxu0
    %v1331 = vadd.f32 %v1227, %v1330
    %v1332 = vpop.f32.mrb[0].mxu0
    %v1333 = vadd.f32 %v1227, %v1332
    %1334 = vmatprep.mubr.f32.mxu0 0.0
    %1335 = vmatmul.mubr.f32.gmra.mrb[0].mxu0 %v1216
    %v1336 = vpop.f32.mrb[0].mxu0
    %v1337 = vadd.f32 %v1232, %v1336
    %v1338 = vpop.f32.mrb[0].mxu0
    %v1339 = vadd.f32 %v1232, %v1338
    %1340 = vmatprep.mubr.f32.mxu0 0.0
    %1341 = vmatmul.mubr.f32.gmra.mrb[0].mxu0 %v1217
    %v1342 = vpop.f32.mrb[0].mxu0
    %v1343 = vadd.f32 %v1237, %v1342
    %v1344 = vpop.f32.mrb[0].mxu0
    %v1345 = vadd.f32 %v1237, %v1344
    %1346 = vmatprep.mubr.f32.mxu0 0.0
    %1347 = vmatmul.mubr.f32.gmra.mrb[0].mxu0 %v1218
    %v1348 = vpop.f32.mrb[0].mxu0
    %v1349 = vadd.f32 %v1242, %v1348
    %v1350 = vpop.f32.mrb[0].mxu0
    %v1351 = vadd.f32 %v1242, %v1350
    %1352 = vmatprep.mubr.f32.mxu0 0.0
    %1353 = vmatmul.mubr.f32.gmra.mrb[0].mxu0 %v1219
    %v1354 = vpop.f32.mrb[0].mxu0
    %v1355 = vadd.f32 %v1247, %v1354
    %v1356 = vpop.f32.mrb[0].mxu0
    %v1357 = vadd.f32 %v1247, %v1356
    %1358 = vmatprep.mubr.f32.mxu0 0.0
    %1359 = vmatmul.mubr.f32.gmra.mrb[0].mxu0 %v1220
    %v1360 = vpop.f32.mrb[0].mxu0
    %v1361 = vadd.f32 %v1252, %v1360
    %v1362 = vpop.f32.mrb[0].mxu0
    %v1363 = vadd.f32 %v1252, %v1362
    %1364 = vmatprep.mubr.f32.mxu0 0.0
    %1365 = vmatmul.mubr.f32.gmra.mrb[0].mxu0 %v1221
    %v1366 = vpop.f32.mrb[0].mxu0
    %v1367 = vadd.f32 %v1257, %v1366
    %v1368 = vpop.f32.mrb[0].mxu0
    %v1369 = vadd.f32 %v1257, %v1368
    %1370 = vmatprep.mubr.f32.mxu0 0.0
    %1371 = vmatmul.mubr.f32.gmra.mrb[0].mxu0 %v1222
    %v1372 = vpop.f32.mrb[0].mxu0
    %v1373 = vadd.f32 %v1262, %v1372
    %v1374 = vpop.f32.mrb[0].mxu0
    %v1375 = vadd.f32 %v1262, %v1374
    %1376 = vdwg.mxu0
    %v1377 = vmax.f32 %v1331, 0.0
    %v1378 = vmax.f32 %v1333, 0.0
    %v1379 = vmax.f32 %v1337, 0.0
    %v1380 = vmax.f32 %v1339, 0.0
    %v1381 = vmax.f32 %v1343, 0.0
    %v1382 = vmax.f32 %v1345, 0.0
    %v1383 = vmax.f32 %v1349, 0.0
    %v1384 = vmax.f32 %v1351, 0.0
    %v1385 = vmax.f32 %v1355, 0.0
    %v1386 = vmax.f32 %v1357, 0.0
    %v1387 = vmax.f32 %v1361, 0.0
    %v1388 = vmax.f32 %v1363, 0.0
    %v1389 = vmax.f32 %v1367, 0.0
    %v1390 = vmax.f32 %v1369, 0.0
    %v1391 = vmax.f32 %v1373, 0.0
    %v1392 = vmax.f32 %v1375, 0.0
    %1394 = vset.pattern.permute.xlu0 0
    %1395 = vperm.xlu0 %1394, %v88
    %v1396 = vpop.permute.xlu0 %1395
    %v1399 = vsel %vm393, %v1223, 0
    %1401 = vmatprep.subr.mxu0 %v1378
    %1402 = vmatpush1.msra.mxu0 %v1377
    %1403 = vmatprep.subr.mxu0 %v1380
    %1404 = vmatpush1.msra.mxu0 %v1379
    %1405 = vmatprep.subr.mxu0 %v1382
    %1406 = vmatpush1.msra.mxu0 %v1381
    %1407 = vmatprep.subr.mxu0 %v1384
    %1408 = vmatpush1.msra.mxu0 %v1383
    %1409 = vmatprep.subr.mxu0 %v1386
    %1410 = vmatpush1.msra.mxu0 %v1385
    %1411 = vmatprep.subr.mxu0 %v1388
    %1412 = vmatpush1.msra.mxu0 %v1387
    %1413 = vmatprep.subr.mxu0 %v1390
    %1414 = vmatpush1.msra.mxu0 %v1389
    %1415 = vmatprep.subr.mxu0 %v1392
    %1416 = vmatpush1.msra.mxu0 %v1391
    %1417 = vmatprep.subr.mxu0 0.0
    %1418 = vmatpush1.msra.mxu0 0.0
    %1419 = vmatprep.subr.mxu0 0.0
    %1420 = vmatpush1.msra.mxu0 0.0
    %1421 = vmatprep.subr.mxu0 0.0
    %1422 = vmatpush1.msra.mxu0 0.0
    %1423 = vmatprep.subr.mxu0 0.0
    %1424 = vmatpush1.msra.mxu0 0.0
    %1425 = vmatprep.subr.mxu0 0.0
    %1426 = vmatpush1.msra.mxu0 0.0
    %1427 = vmatprep.subr.mxu0 0.0
    %1428 = vmatpush1.msra.mxu0 0.0
    %1429 = vmatprep.subr.mxu0 0.0
    %1430 = vmatpush1.msra.mxu0 0.0
    %1431 = vmatprep.subr.mxu0 0.0
    %1432 = vmatpush1.msra.mxu0 0.0
    %1433 = vmatprep.subr.mxu0 0.0
    %1434 = vmatpush1.msra.mxu0 0.0
    %1435 = vmatprep.subr.mxu0 0.0
    %1436 = vmatpush1.msra.mxu0 0.0
    %1437 = vmatprep.subr.mxu0 0.0
    %1438 = vmatpush1.msra.mxu0 0.0
    %1439 = vmatprep.subr.mxu0 0.0
    %1440 = vmatpush1.msra.mxu0 0.0
    %1441 = vmatprep.subr.mxu0 0.0
    %1442 = vmatpush1.msra.mxu0 0.0
    %1443 = vmatprep.subr.mxu0 0.0
    %1444 = vmatpush1.msra.mxu0 0.0
    %1445 = vmatprep.subr.mxu0 0.0
    %1446 = vmatpush1.msra.mxu0 0.0
    %1447 = vmatprep.subr.mxu0 0.0
    %1448 = vmatpush1.msra.mxu0 0.0
    %1449 = vmatprep.subr.mxu0 0.0
    %1450 = vmatpush1.msra.mxu0 0.0
    %1451 = vmatprep.subr.mxu0 0.0
    %1452 = vmatpush1.msra.mxu0 0.0
    %1453 = vmatprep.subr.mxu0 0.0
    %1454 = vmatpush1.msra.mxu0 0.0
    %1455 = vmatprep.subr.mxu0 0.0
    %1456 = vmatpush1.msra.mxu0 0.0
    %1457 = vmatprep.subr.mxu0 0.0
    %1458 = vmatpush1.msra.mxu0 0.0
    %1459 = vmatprep.subr.mxu0 0.0
    %1460 = vmatpush1.msra.mxu0 0.0
    %1461 = vmatprep.subr.mxu0 0.0
    %1462 = vmatpush1.msra.mxu0 0.0
    %1463 = vmatprep.subr.mxu0 0.0
    %1464 = vmatpush1.msra.mxu0 0.0
    %1465 = vmatprep.mubr.f32.mxu0 0.0
    %1466 = vmatmul.mubr.f32.gmra.mrb[0].mxu0 %v1399
    %v1467 = vpop.f32.mrb[0].mxu0
    %v1468 = vadd.f32 %v1396, %v1467
    %v1469 = vpop.f32.mrb[0].mxu0
    %v1470 = vadd.f32 %v1396, %v1469
    %1471 = vdwg.mxu0
    %v1474 = vrot.slane %v1468, 1
    %v1475 = vrot.slane %v1470, 1
    %v1478 = vmin.f32 %v1468, %v1474
    %v1479 = vmin.f32 %v1470, %v1475
    %v1482 = vcombine.low %v1478, %v1479
    %v1484 = vunpack.c.l.s4 1966171168
    %v1485 = vunpack.c.0.s8 %v1484
    %v1486 = vlaneseq
    %v1487 = vshrl.u32 %v1486, 7
    %v1488 = vsub.s32 %v1485, %v1487
    %v1489 = vrot.slane %v1482, %v1488
    %v1491 = vunpack.c.l.s4 1966171168
    %v1492 = vunpack.c.0.s8 %v1491
    %v1493 = vlaneseq
    %v1494 = vshrl.u32 %v1493, 7
    %v1495 = vsub.s32 %v1492, %v1494
    %v1496 = vrot.slane %v1489, %v1495
    %v1498 = vlaneseq
    %vm1499 = vcmp.ge.s32.totalorder %v1498, 0
    %vm1500 = vcmp.lt.s32.totalorder %v1498, 256
    %vm1501 = vmand %vm1499, %vm1500
    %1502 = vst.msk [vmem:[#allocation2] sm:$0x3] %vm1501, %v1496
    // Predicated region
    $region26: #{tpu_custom_call.1} parent=1 // pred_check
      _
    $region27: #{tpu_custom_call.1} parent=1 // pred_check_branch
      %1504 = sbr.rel (0) target = $region29
    $region28: #{tpu_custom_call.1} parent=1 // pred_region
      %s1506 = ssub.s32 32, 32
      %1507 = vsyncadd [#allocation3], %s1506
      %s1509 = sshll.u32 [#allocation2], 4
      %s1510 = int_to_ptr.vmem [resolvable:$true] %s1509
      %1512 = dma.vmem_to_hbm [thread:$0]  %s1510, 32, %s6, [#allocation3]
    $region29: #{tpu_custom_call.1} parent=1 // pred_fallthru
      _
    // Predicated region
    $region30: #{tpu_custom_call.1} parent=1 // pred_check
      _
    $region31: #{tpu_custom_call.1} parent=1 // pred_check_branch
      %1514 = sbr.rel (0) target = $region33
    $region32: #{tpu_custom_call.1} parent=1 // pred_region
      %1515 = dma.done [#allocation3], 32
    $region33: #{tpu_custom_call.1} parent=1 // pred_fallthru
      _
    %1516 = vsyncpa [#allocation3], 1

</llo_original>
